<compile_context>
chip_gen: v5e
topology: v5e:2x2
jax: 0.10.0
libtpu: 0.0.40
codegen_flags: <defaults>
</compile_context>

<pallas_src>
import numpy as np

import jax
import jax.numpy as jnp
from jax.experimental import pallas as pl
from jax.experimental.pallas import tpu as pltpu


_LANES = 256  # slab lane width (max sub-tensor width; multiple of 128)


# ----------------------------------------------------------------------------
# Structural 0/1 (and 0.25 / 1/n) matrices: pooling, GAP, channel-attention
# broadcast and nearest upsampling expressed as matmuls (all exact in bf16).
# Built once on host for the total image count (2 * batch: x and y branches).
# ----------------------------------------------------------------------------
def _pool_matrix(b, h, w):
    oh, ow = h // 2, w // 2
    m = np.zeros((b * oh * ow, b * h * w), np.float32)
    for bi in range(b):
        for i in range(oh):
            for j in range(ow):
                r = bi * oh * ow + i * ow + j
                for di in range(2):
                    for dj in range(2):
                        m[r, bi * h * w + (2 * i + di) * w + (2 * j + dj)] = 0.25
    return m


def _gap_matrix(b, n):
    m = np.zeros((b, b * n), np.float32)
    for bi in range(b):
        m[bi, bi * n:(bi + 1) * n] = 1.0 / n
    return m


def _expand_matrix(b, n):
    return (_gap_matrix(b, n).T > 0).astype(np.float32)        # (b*n, b) 0/1


def _upsample_matrix(b, h, w, f):
    oh, ow = h * f, w * f
    m = np.zeros((b * oh * ow, b * h * w), np.float32)
    for bi in range(b):
        for i in range(oh):
            for j in range(ow):
                m[bi * oh * ow + i * ow + j,
                  bi * h * w + (i // f) * w + (j // f)] = 1.0
    return m


def _final_up_matrices(b):
    """Coarse (b,4,4) seg -> lane-dense (b, 256) fine seg via UM @ (seg * UN)."""
    UN = np.zeros((b * 16, 256), np.float32)
    for bi in range(b):
        for q in range(16):
            ci, cj = q // 4, q % 4
            for i in range(16):
                for j in range(16):
                    if (i // 4 == ci) and (j // 4 == cj):
                        UN[bi * 16 + q, i * 16 + j] = 1.0
    UM = np.zeros((b, b * 16), np.float32)
    for bi in range(b):
        UM[bi, bi * 16:(bi + 1) * 16] = 1.0
    return UM, UN


def build_consts(n_imgs):
    UM, UN = _final_up_matrices(n_imgs)
    return {
        "P1": _pool_matrix(n_imgs, 8, 8),        # 8x8 -> 4x4 avg pool
        "P2": _pool_matrix(n_imgs, 4, 4),        # 4x4 -> 2x2 avg pool
        "Gd": _gap_matrix(n_imgs, 4),            # GAP over 2x2 deep feats
        "Ed": _expand_matrix(n_imgs, 4),
        "Gl": _gap_matrix(n_imgs, 16),           # GAP over 4x4 low feats
        "El": _expand_matrix(n_imgs, 16),
        "U2": _upsample_matrix(n_imgs, 2, 2, 2), # nearest x2: 2x2 -> 4x4
        "UM": UM,                                # nearest x4, lane-dense emit
        "UN": UN,
    }


# ----------------------------------------------------------------------------
# Parameters (deterministic synthetic init), packed into one bf16 slab.
# ----------------------------------------------------------------------------
def _linear_init(key, fan_in, fan_out):
    kw, kb = jax.random.split(key)
    w = jax.random.normal(kw, (fan_in, fan_out), jnp.float32) / jnp.sqrt(
        jnp.asarray(fan_in, jnp.float32))
    b = 0.01 * jax.random.normal(kb, (fan_out,), jnp.float32)
    return w, b


def init_params(key):
    names_shapes = [
        ("enc1", 4, 8), ("enc2", 8, 32), ("enc3", 32, 64),
        ("enc4", 64, 96), ("enc5", 96, 128),
        ("mlp1a", 128, 256), ("mlp2a", 256, 128),
        ("mlp1b", 32, 256), ("mlp2b", 256, 32),
        ("aspp", 128, 64), ("skip", 32, 16), ("fuse", 80, 64),
        ("seghead", 64, 1),
    ]
    keys = jax.random.split(key, len(names_shapes))
    return {name: _linear_init(k, fi, fo)
            for k, (name, fi, fo) in zip(keys, names_shapes)}


def pack_slab(params, consts):
    """Pack every weight/bias/const into one (R, 256) bf16 slab.

    Each sub-tensor starts on an 8-sublane boundary at lane 0; returns the
    slab plus a {name: (row_offset, rows, cols)} map used for static in-kernel
    ref slices.
    """
    entries = []
    for pname, wname, bname in [
        ("enc1", "e1w", "e1b"), ("enc2", "e2w", "e2b"), ("enc3", "e3w", "e3b"),
        ("enc4", "e4w", "e4b"), ("enc5", "e5w", "e5b"),
        ("mlp1a", "m1aw", "m1ab"), ("mlp2a", "m2aw", "m2ab"),
        ("mlp1b", "m1bw", "m1bb"), ("mlp2b", "m2bw", "m2bb"),
        ("aspp", "aw", "ab"), ("skip", "skw", "skb"),
    ]:
        w, b = params[pname]
        entries.append((wname, w))
        entries.append((bname, np.asarray(b).reshape(1, -1)))
    fw, fb = params["fuse"]
    entries += [("fwa", fw[:64]), ("fwb", fw[64:]),          # split weight:
                ("fb", np.asarray(fb).reshape(1, -1))]       # no in-kernel concat
    sw, sb = params["seghead"]
    entries += [("segw", np.asarray(sw).reshape(1, -1)),     # seg head as row
                ("segb", np.asarray(sb).reshape(1, 1))]
    for name in ("P1", "P2", "Gd", "Ed", "Gl", "El", "U2", "UM", "UN"):
        entries.append((name, consts[name]))

    offsets = {}
    chunks = []
    row = 0
    for name, arr in entries:
        a = np.asarray(arr, np.float32)
        r, c = a.shape
        assert c <= _LANES, (name, a.shape)
        pr = ((r + 7) // 8) * 8
        buf = np.zeros((pr, _LANES), np.float32)
        buf[:r, :c] = a
        offsets[name] = (row, r, c)
        chunks.append(buf)
        row += pr
    slab = np.concatenate(chunks, axis=0)                    # (~1.5K rows, 256)
    return jnp.asarray(slab, jnp.bfloat16), offsets


# ----------------------------------------------------------------------------
# Single fused Pallas kernel: encoder -> channel attention -> decoder -> head.
# Both branches (x, y) and the batch are folded into the M dimension:
#   xp: (Bt*64, 4) with Bt = 2*B  ->  o: (Bt, 256) lane-dense seg logits.
# ----------------------------------------------------------------------------
def make_kernel(offs):
    def kernel(xp_ref, slab_ref, o_ref):
        f32, bf16 = jnp.float32, jnp.bfloat16

        def w(name):                       # bf16 weight / structural matrix
            off, r, c = offs[name]
            return slab_ref[off:off + r, 0:c]

        def wf(name):                      # f32 copy (biases, VPU operands)
            return w(name).astype(f32)

        def dot(a, b):                     # bf16 MXU inputs, f32 accumulation
            return jnp.dot(a.astype(bf16), b.astype(bf16),
                           preferred_element_type=f32)

        relu = lambda v: jnp.maximum(v, 0.0)

        xp = xp_ref[...]                                           # (Bt*64, 4) f32

        # ---- synthetic encoder (1x1 convs; avg pooling as P1/P2 matmuls) ---
        h1 = relu(dot(xp, w("e1w")) + wf("e1b"))                   # (Bt*64,   8)
        h2 = relu(dot(dot(w("P1"), h1), w("e2w")) + wf("e2b"))     # (Bt*16,  32)  feats[-4]
        h3 = relu(dot(h2, w("e3w")) + wf("e3b"))                   # (Bt*16,  64)
        h4 = relu(dot(dot(w("P2"), h3), w("e4w")) + wf("e4b"))     # (Bt*4,   96)
        h5 = relu(dot(h4, w("e5w")) + wf("e5b"))                   # (Bt*4,  128)  feats[-1]

        # ---- channel attention: GAP -> Linear -> tanh -> Linear -> sigmoid -
        ad = jax.nn.sigmoid(
            dot(jnp.tanh(dot(dot(w("Gd"), h5), w("m1aw")) + wf("m1ab")),
                w("m2aw")) + wf("m2ab"))                           # (Bt, 128)
        al = jax.nn.sigmoid(
            dot(jnp.tanh(dot(dot(w("Gl"), h2), w("m1bw")) + wf("m1bb")),
                w("m2bw")) + wf("m2bb"))                           # (Bt,  32)
        # spatially-constant multiply (== interpolate-then-multiply of spec)
        h5m = h5 * dot(w("Ed"), ad)                                # (Bt*4, 128)
        h2m = h2 * dot(w("El"), al)                                # (Bt*16, 32)

        # ---- simplified DeepLabV3+ decoder ---------------------------------
        aspp = relu(dot(h5m, w("aw")) + wf("ab"))                  # (Bt*4,  64)
        skip = relu(dot(h2m, w("skw")) + wf("skb"))                # (Bt*16, 16)
        # reassociated: apply fuse weight A at coarse 2x2, then nearest x2 up
        fused = relu(dot(w("U2"), dot(aspp, w("fwa")))
                     + dot(skip, w("fwb")) + wf("fb"))             # (Bt*16, 64)

        # ---- seg head: 64 -> 1 as VPU multiply + lane reduce ---------------
        seg = (jnp.sum(fused * wf("segw"), axis=-1, keepdims=True)
               + wf("segb"))                                       # (Bt*16, 1)

        # ---- nearest x4 upsample, lane-dense; f32 dot = exact selection ----
        o_ref[...] = jnp.dot(wf("UM"), seg * wf("UN"),
                             preferred_element_type=f32)           # (Bt, 256)

    return kernel


# ----------------------------------------------------------------------------
# Model builder + forward (both images in one fused single-program kernel).
# ----------------------------------------------------------------------------
def build_model(key, batch):
    params = init_params(key)
    consts = build_consts(2 * batch)          # x and y branches folded into M
    slab, offs = pack_slab(params, consts)
    kernel = make_kernel(offs)

    @jax.jit
    def forward(slab_arg, x_nchw, y_nchw):
        B = x_nchw.shape[0]
        # Preamble: stack x/y, NCHW -> channels-last, 16x16 -> 8x8 avg pool.
        # TODO(synk): fold this pool into the kernel via a P0 matrix if the
        # XLA preamble dispatch ever shows up in a profile.
        xy = jnp.stack([x_nchw, y_nchw], axis=0)                  # (2,B,4,16,16)
        xy = jnp.transpose(xy, (0, 1, 3, 4, 2))                   # (2,B,16,16,4)
        xy = xy.reshape(2 * B, 8, 2, 8, 2, 4).mean(axis=(2, 4))   # (2B,8,8,4)
        xp = xy.reshape(2 * B * 64, 4)

        out = pl.pallas_call(
            kernel,
            out_shape=jax.ShapeDtypeStruct((2 * B, 256), jnp.float32),
            compiler_params=pltpu.CompilerParams(
                vmem_limit_bytes=32 * 1024 * 1024),
        )(xp, slab_arg)                                           # (2B, 256)

        seg = out.reshape(2, B, 1, 16, 16)                        # NCHW, C=1
        return seg[0], seg[1]

    return slab, forward


if __name__ == "__main__":
    key = jax.random.PRNGKey(0)
    kx, ky, kp = jax.random.split(key, 3)
    x = jax.random.normal(kx, (2, 4, 16, 16), jnp.float32)   # NCHW, like PyTorch
    y = jax.random.normal(ky, (2, 4, 16, 16), jnp.float32)

    slab, forward = build_model(kp, batch=2)
    seg_x, seg_y = forward(slab, x, y)
    jax.block_until_ready((seg_x, seg_y))

    assert seg_x.shape == (2, 1, 16, 16), seg_x.shape
    assert seg_y.shape == (2, 1, 16, 16), seg_y.shape
    assert jnp.all(jnp.isfinite(seg_x)) and jnp.all(jnp.isfinite(seg_y))
    print("KERNEL_OK")
</pallas_src>

<mosaic_0001>
module attributes {stable_mosaic.version = 11 : i64} {
  func.func @kernel(%arg0: memref<256x4xf32, #tpu.memory_space<vmem>>, %arg1: memref<1544x256xbf16, #tpu.memory_space<vmem>>, %arg2: memref<4x256xf32, #tpu.memory_space<vmem>>) attributes {dimension_semantics = [], scalar_prefetch = 0 : i64, scratch_operands = 0 : i64, tpu.core_type = #tpu.core_type<tc>} {
    %c0 = arith.constant 0 : index
    %c0_0 = arith.constant 0 : index
    %0 = vector.load %arg0[%c0, %c0_0] : memref<256x4xf32, #tpu.memory_space<vmem>>, vector<256x4xf32>
    %c0_1 = arith.constant 0 : index
    %c0_2 = arith.constant 0 : index
    %1 = vector.load %arg1[%c0_1, %c0_2] : memref<1544x256xbf16, #tpu.memory_space<vmem>>, vector<4x8xbf16>
    %2 = arith.truncf %0 : vector<256x4xf32> to vector<256x4xbf16>
    %cst = arith.constant dense<0.000000e+00> : vector<256x8xf32>
    %3 = tpu.matmul %2, %1, %cst {dimension_numbers = #tpu.dot_dimension_numbers<[1], [0], [0], [1], [0, 0, 1, 1], [], []>} : vector<256x4xbf16>, vector<4x8xbf16>, vector<256x8xf32> -> vector<256x8xf32>
    %c8 = arith.constant 8 : index
    %c0_3 = arith.constant 0 : index
    %4 = vector.load %arg1[%c8, %c0_3] : memref<1544x256xbf16, #tpu.memory_space<vmem>>, vector<1x8xbf16>
    %5 = arith.extf %4 : vector<1x8xbf16> to vector<1x8xf32>
    %6 = vector.broadcast %5 : vector<1x8xf32> to vector<256x8xf32>
    %7 = arith.addf %3, %6 : vector<256x8xf32>
    %cst_4 = arith.constant 0.000000e+00 : f32
    %8 = vector.broadcast %cst_4 : f32 to vector<256x8xf32>
    %9 = arith.maximumf %7, %8 : vector<256x8xf32>
    %c1232 = arith.constant 1232 : index
    %c0_5 = arith.constant 0 : index
    %10 = vector.load %arg1[%c1232, %c0_5] : memref<1544x256xbf16, #tpu.memory_space<vmem>>, vector<64x256xbf16>
    %11 = arith.truncf %9 : vector<256x8xf32> to vector<256x8xbf16>
    %cst_6 = arith.constant dense<0.000000e+00> : vector<64x8xf32>
    %12 = tpu.matmul %10, %11, %cst_6 {dimension_numbers = #tpu.dot_dimension_numbers<[1], [0], [0], [1], [0, 0, 1, 1], [], []>} : vector<64x256xbf16>, vector<256x8xbf16>, vector<64x8xf32> -> vector<64x8xf32>
    %c16 = arith.constant 16 : index
    %c0_7 = arith.constant 0 : index
    %13 = vector.load %arg1[%c16, %c0_7] : memref<1544x256xbf16, #tpu.memory_space<vmem>>, vector<8x32xbf16>
    %14 = arith.truncf %12 : vector<64x8xf32> to vector<64x8xbf16>
    %cst_8 = arith.constant dense<0.000000e+00> : vector<64x32xf32>
    %15 = tpu.matmul %14, %13, %cst_8 {dimension_numbers = #tpu.dot_dimension_numbers<[1], [0], [0], [1], [0, 0, 1, 1], [], []>} : vector<64x8xbf16>, vector<8x32xbf16>, vector<64x32xf32> -> vector<64x32xf32>
    %c24 = arith.constant 24 : index
    %c0_9 = arith.constant 0 : index
    %16 = vector.load %arg1[%c24, %c0_9] : memref<1544x256xbf16, #tpu.memory_space<vmem>>, vector<1x32xbf16>
    %17 = arith.extf %16 : vector<1x32xbf16> to vector<1x32xf32>
    %18 = vector.broadcast %17 : vector<1x32xf32> to vector<64x32xf32>
    %19 = arith.addf %15, %18 : vector<64x32xf32>
    %cst_10 = arith.constant 0.000000e+00 : f32
    %20 = vector.broadcast %cst_10 : f32 to vector<64x32xf32>
    %21 = arith.maximumf %19, %20 : vector<64x32xf32>
    %c32 = arith.constant 32 : index
    %c0_11 = arith.constant 0 : index
    %22 = vector.load %arg1[%c32, %c0_11] : memref<1544x256xbf16, #tpu.memory_space<vmem>>, vector<32x64xbf16>
    %23 = arith.truncf %21 : vector<64x32xf32> to vector<64x32xbf16>
    %cst_12 = arith.constant dense<0.000000e+00> : vector<64x64xf32>
    %24 = tpu.matmul %23, %22, %cst_12 {dimension_numbers = #tpu.dot_dimension_numbers<[1], [0], [0], [1], [0, 0, 1, 1], [], []>} : vector<64x32xbf16>, vector<32x64xbf16>, vector<64x64xf32> -> vector<64x64xf32>
    %c64 = arith.constant 64 : index
    %c0_13 = arith.constant 0 : index
    %25 = vector.load %arg1[%c64, %c0_13] : memref<1544x256xbf16, #tpu.memory_space<vmem>>, vector<1x64xbf16>
    %26 = arith.extf %25 : vector<1x64xbf16> to vector<1x64xf32>
    %27 = vector.broadcast %26 : vector<1x64xf32> to vector<64x64xf32>
    %28 = arith.addf %24, %27 : vector<64x64xf32>
    %cst_14 = arith.constant 0.000000e+00 : f32
    %29 = vector.broadcast %cst_14 : f32 to vector<64x64xf32>
    %30 = arith.maximumf %28, %29 : vector<64x64xf32>
    %c1296 = arith.constant 1296 : index
    %c0_15 = arith.constant 0 : index
    %31 = vector.load %arg1[%c1296, %c0_15] : memref<1544x256xbf16, #tpu.memory_space<vmem>>, vector<16x64xbf16>
    %32 = arith.truncf %30 : vector<64x64xf32> to vector<64x64xbf16>
    %cst_16 = arith.constant dense<0.000000e+00> : vector<16x64xf32>
    %33 = tpu.matmul %31, %32, %cst_16 {dimension_numbers = #tpu.dot_dimension_numbers<[1], [0], [0], [1], [0, 0, 1, 1], [], []>} : vector<16x64xbf16>, vector<64x64xbf16>, vector<16x64xf32> -> vector<16x64xf32>
    %c72 = arith.constant 72 : index
    %c0_17 = arith.constant 0 : index
    %34 = vector.load %arg1[%c72, %c0_17] : memref<1544x256xbf16, #tpu.memory_space<vmem>>, vector<64x96xbf16>
    %35 = arith.truncf %33 : vector<16x64xf32> to vector<16x64xbf16>
    %cst_18 = arith.constant dense<0.000000e+00> : vector<16x96xf32>
    %36 = tpu.matmul %35, %34, %cst_18 {dimension_numbers = #tpu.dot_dimension_numbers<[1], [0], [0], [1], [0, 0, 1, 1], [], []>} : vector<16x64xbf16>, vector<64x96xbf16>, vector<16x96xf32> -> vector<16x96xf32>
    %c136 = arith.constant 136 : index
    %c0_19 = arith.constant 0 : index
    %37 = vector.load %arg1[%c136, %c0_19] : memref<1544x256xbf16, #tpu.memory_space<vmem>>, vector<1x96xbf16>
    %38 = arith.extf %37 : vector<1x96xbf16> to vector<1x96xf32>
    %39 = vector.broadcast %38 : vector<1x96xf32> to vector<16x96xf32>
    %40 = arith.addf %36, %39 : vector<16x96xf32>
    %cst_20 = arith.constant 0.000000e+00 : f32
    %41 = vector.broadcast %cst_20 : f32 to vector<16x96xf32>
    %42 = arith.maximumf %40, %41 : vector<16x96xf32>
    %c144 = arith.constant 144 : index
    %c0_21 = arith.constant 0 : index
    %43 = vector.load %arg1[%c144, %c0_21] : memref<1544x256xbf16, #tpu.memory_space<vmem>>, vector<96x128xbf16>
    %44 = arith.truncf %42 : vector<16x96xf32> to vector<16x96xbf16>
    %cst_22 = arith.constant dense<0.000000e+00> : vector<16x128xf32>
    %45 = tpu.matmul %44, %43, %cst_22 {dimension_numbers = #tpu.dot_dimension_numbers<[1], [0], [0], [1], [0, 0, 1, 1], [], []>} : vector<16x96xbf16>, vector<96x128xbf16>, vector<16x128xf32> -> vector<16x128xf32>
    %c240 = arith.constant 240 : index
    %c0_23 = arith.constant 0 : index
    %46 = vector.load %arg1[%c240, %c0_23] : memref<1544x256xbf16, #tpu.memory_space<vmem>>, vector<1x128xbf16>
    %47 = arith.extf %46 : vector<1x128xbf16> to vector<1x128xf32>
    %48 = vector.broadcast %47 : vector<1x128xf32> to vector<16x128xf32>
    %49 = arith.addf %45, %48 : vector<16x128xf32>
    %cst_24 = arith.constant 0.000000e+00 : f32
    %50 = vector.broadcast %cst_24 : f32 to vector<16x128xf32>
    %51 = arith.maximumf %49, %50 : vector<16x128xf32>
    %c1312 = arith.constant 1312 : index
    %c0_25 = arith.constant 0 : index
    %52 = vector.load %arg1[%c1312, %c0_25] : memref<1544x256xbf16, #tpu.memory_space<vmem>>, vector<4x16xbf16>
    %53 = arith.truncf %51 : vector<16x128xf32> to vector<16x128xbf16>
    %cst_26 = arith.constant dense<0.000000e+00> : vector<4x128xf32>
    %54 = tpu.matmul %52, %53, %cst_26 {dimension_numbers = #tpu.dot_dimension_numbers<[1], [0], [0], [1], [0, 0, 1, 1], [], []>} : vector<4x16xbf16>, vector<16x128xbf16>, vector<4x128xf32> -> vector<4x128xf32>
    %c248 = arith.constant 248 : index
    %c0_27 = arith.constant 0 : index
    %55 = vector.load %arg1[%c248, %c0_27] : memref<1544x256xbf16, #tpu.memory_space<vmem>>, vector<128x256xbf16>
    %56 = arith.truncf %54 : vector<4x128xf32> to vector<4x128xbf16>
    %cst_28 = arith.constant dense<0.000000e+00> : vector<4x256xf32>
    %57 = tpu.matmul %56, %55, %cst_28 {dimension_numbers = #tpu.dot_dimension_numbers<[1], [0], [0], [1], [0, 0, 1, 1], [], []>} : vector<4x128xbf16>, vector<128x256xbf16>, vector<4x256xf32> -> vector<4x256xf32>
    %c376 = arith.constant 376 : index
    %c0_29 = arith.constant 0 : index
    %58 = vector.load %arg1[%c376, %c0_29] : memref<1544x256xbf16, #tpu.memory_space<vmem>>, vector<1x256xbf16>
    %59 = arith.extf %58 : vector<1x256xbf16> to vector<1x256xf32>
    %60 = vector.broadcast %59 : vector<1x256xf32> to vector<4x256xf32>
    %61 = arith.addf %57, %60 : vector<4x256xf32>
    %62 = math.tanh %61 : vector<4x256xf32>
    %c384 = arith.constant 384 : index
    %c0_30 = arith.constant 0 : index
    %63 = vector.load %arg1[%c384, %c0_30] : memref<1544x256xbf16, #tpu.memory_space<vmem>>, vector<256x128xbf16>
    %64 = arith.truncf %62 : vector<4x256xf32> to vector<4x256xbf16>
    %cst_31 = arith.constant dense<0.000000e+00> : vector<4x128xf32>
    %65 = tpu.matmul %64, %63, %cst_31 {dimension_numbers = #tpu.dot_dimension_numbers<[1], [0], [0], [1], [0, 0, 1, 1], [], []>} : vector<4x256xbf16>, vector<256x128xbf16>, vector<4x128xf32> -> vector<4x128xf32>
    %c640 = arith.constant 640 : index
    %c0_32 = arith.constant 0 : index
    %66 = vector.load %arg1[%c640, %c0_32] : memref<1544x256xbf16, #tpu.memory_space<vmem>>, vector<1x128xbf16>
    %67 = arith.extf %66 : vector<1x128xbf16> to vector<1x128xf32>
    %68 = vector.broadcast %67 : vector<1x128xf32> to vector<4x128xf32>
    %69 = arith.addf %65, %68 : vector<4x128xf32>
    %70 = arith.negf %69 : vector<4x128xf32>
    %71 = math.exp %70 : vector<4x128xf32>
    %cst_33 = arith.constant 1.000000e+00 : f32
    %72 = vector.broadcast %cst_33 : f32 to vector<4x128xf32>
    %73 = arith.addf %72, %71 : vector<4x128xf32>
    %74 = arith.divf %72, %73 : vector<4x128xf32>
    %c1336 = arith.constant 1336 : index
    %c0_34 = arith.constant 0 : index
    %75 = vector.load %arg1[%c1336, %c0_34] : memref<1544x256xbf16, #tpu.memory_space<vmem>>, vector<4x64xbf16>
    %76 = arith.truncf %21 : vector<64x32xf32> to vector<64x32xbf16>
    %cst_35 = arith.constant dense<0.000000e+00> : vector<4x32xf32>
    %77 = tpu.matmul %75, %76, %cst_35 {dimension_numbers = #tpu.dot_dimension_numbers<[1], [0], [0], [1], [0, 0, 1, 1], [], []>} : vector<4x64xbf16>, vector<64x32xbf16>, vector<4x32xf32> -> vector<4x32xf32>
    %c648 = arith.constant 648 : index
    %c0_36 = arith.constant 0 : index
    %78 = vector.load %arg1[%c648, %c0_36] : memref<1544x256xbf16, #tpu.memory_space<vmem>>, vector<32x256xbf16>
    %79 = arith.truncf %77 : vector<4x32xf32> to vector<4x32xbf16>
    %cst_37 = arith.constant dense<0.000000e+00> : vector<4x256xf32>
    %80 = tpu.matmul %79, %78, %cst_37 {dimension_numbers = #tpu.dot_dimension_numbers<[1], [0], [0], [1], [0, 0, 1, 1], [], []>} : vector<4x32xbf16>, vector<32x256xbf16>, vector<4x256xf32> -> vector<4x256xf32>
    %c680 = arith.constant 680 : index
    %c0_38 = arith.constant 0 : index
    %81 = vector.load %arg1[%c680, %c0_38] : memref<1544x256xbf16, #tpu.memory_space<vmem>>, vector<1x256xbf16>
    %82 = arith.extf %81 : vector<1x256xbf16> to vector<1x256xf32>
    %83 = vector.broadcast %82 : vector<1x256xf32> to vector<4x256xf32>
    %84 = arith.addf %80, %83 : vector<4x256xf32>
    %85 = math.tanh %84 : vector<4x256xf32>
    %c688 = arith.constant 688 : index
    %c0_39 = arith.constant 0 : index
    %86 = vector.load %arg1[%c688, %c0_39] : memref<1544x256xbf16, #tpu.memory_space<vmem>>, vector<256x32xbf16>
    %87 = arith.truncf %85 : vector<4x256xf32> to vector<4x256xbf16>
    %cst_40 = arith.constant dense<0.000000e+00> : vector<4x32xf32>
    %88 = tpu.matmul %87, %86, %cst_40 {dimension_numbers = #tpu.dot_dimension_numbers<[1], [0], [0], [1], [0, 0, 1, 1], [], []>} : vector<4x256xbf16>, vector<256x32xbf16>, vector<4x32xf32> -> vector<4x32xf32>
    %c944 = arith.constant 944 : index
    %c0_41 = arith.constant 0 : index
    %89 = vector.load %arg1[%c944, %c0_41] : memref<1544x256xbf16, #tpu.memory_space<vmem>>, vector<1x32xbf16>
    %90 = arith.extf %89 : vector<1x32xbf16> to vector<1x32xf32>
    %91 = vector.broadcast %90 : vector<1x32xf32> to vector<4x32xf32>
    %92 = arith.addf %88, %91 : vector<4x32xf32>
    %93 = arith.negf %92 : vector<4x32xf32>
    %94 = math.exp %93 : vector<4x32xf32>
    %cst_42 = arith.constant 1.000000e+00 : f32
    %95 = vector.broadcast %cst_42 : f32 to vector<4x32xf32>
    %96 = arith.addf %95, %94 : vector<4x32xf32>
    %97 = arith.divf %95, %96 : vector<4x32xf32>
    %c1320 = arith.constant 1320 : index
    %c0_43 = arith.constant 0 : index
    %98 = vector.load %arg1[%c1320, %c0_43] : memref<1544x256xbf16, #tpu.memory_space<vmem>>, vector<16x4xbf16>
    %99 = arith.truncf %74 : vector<4x128xf32> to vector<4x128xbf16>
    %cst_44 = arith.constant dense<0.000000e+00> : vector<16x128xf32>
    %100 = tpu.matmul %98, %99, %cst_44 {dimension_numbers = #tpu.dot_dimension_numbers<[1], [0], [0], [1], [0, 0, 1, 1], [], []>} : vector<16x4xbf16>, vector<4x128xbf16>, vector<16x128xf32> -> vector<16x128xf32>
    %101 = arith.mulf %51, %100 : vector<16x128xf32>
    %c1344 = arith.constant 1344 : index
    %c0_45 = arith.constant 0 : index
    %102 = vector.load %arg1[%c1344, %c0_45] : memref<1544x256xbf16, #tpu.memory_space<vmem>>, vector<64x4xbf16>
    %103 = arith.truncf %97 : vector<4x32xf32> to vector<4x32xbf16>
    %cst_46 = arith.constant dense<0.000000e+00> : vector<64x32xf32>
    %104 = tpu.matmul %102, %103, %cst_46 {dimension_numbers = #tpu.dot_dimension_numbers<[1], [0], [0], [1], [0, 0, 1, 1], [], []>} : vector<64x4xbf16>, vector<4x32xbf16>, vector<64x32xf32> -> vector<64x32xf32>
    %105 = arith.mulf %21, %104 : vector<64x32xf32>
    %c952 = arith.constant 952 : index
    %c0_47 = arith.constant 0 : index
    %106 = vector.load %arg1[%c952, %c0_47] : memref<1544x256xbf16, #tpu.memory_space<vmem>>, vector<128x64xbf16>
    %107 = arith.truncf %101 : vector<16x128xf32> to vector<16x128xbf16>
    %cst_48 = arith.constant dense<0.000000e+00> : vector<16x64xf32>
    %108 = tpu.matmul %107, %106, %cst_48 {dimension_numbers = #tpu.dot_dimension_numbers<[1], [0], [0], [1], [0, 0, 1, 1], [], []>} : vector<16x128xbf16>, vector<128x64xbf16>, vector<16x64xf32> -> vector<16x64xf32>
    %c1080 = arith.constant 1080 : index
    %c0_49 = arith.constant 0 : index
    %109 = vector.load %arg1[%c1080, %c0_49] : memref<1544x256xbf16, #tpu.memory_space<vmem>>, vector<1x64xbf16>
    %110 = arith.extf %109 : vector<1x64xbf16> to vector<1x64xf32>
    %111 = vector.broadcast %110 : vector<1x64xf32> to vector<16x64xf32>
    %112 = arith.addf %108, %111 : vector<16x64xf32>
    %cst_50 = arith.constant 0.000000e+00 : f32
    %113 = vector.broadcast %cst_50 : f32 to vector<16x64xf32>
    %114 = arith.maximumf %112, %113 : vector<16x64xf32>
    %c1088 = arith.constant 1088 : index
    %c0_51 = arith.constant 0 : index
    %115 = vector.load %arg1[%c1088, %c0_51] : memref<1544x256xbf16, #tpu.memory_space<vmem>>, vector<32x16xbf16>
    %116 = arith.truncf %105 : vector<64x32xf32> to vector<64x32xbf16>
    %cst_52 = arith.constant dense<0.000000e+00> : vector<64x16xf32>
    %117 = tpu.matmul %116, %115, %cst_52 {dimension_numbers = #tpu.dot_dimension_numbers<[1], [0], [0], [1], [0, 0, 1, 1], [], []>} : vector<64x32xbf16>, vector<32x16xbf16>, vector<64x16xf32> -> vector<64x16xf32>
    %c1120 = arith.constant 1120 : index
    %c0_53 = arith.constant 0 : index
    %118 = vector.load %arg1[%c1120, %c0_53] : memref<1544x256xbf16, #tpu.memory_space<vmem>>, vector<1x16xbf16>
    %119 = arith.extf %118 : vector<1x16xbf16> to vector<1x16xf32>
    %120 = vector.broadcast %119 : vector<1x16xf32> to vector<64x16xf32>
    %121 = arith.addf %117, %120 : vector<64x16xf32>
    %cst_54 = arith.constant 0.000000e+00 : f32
    %122 = vector.broadcast %cst_54 : f32 to vector<64x16xf32>
    %123 = arith.maximumf %121, %122 : vector<64x16xf32>
    %c1408 = arith.constant 1408 : index
    %c0_55 = arith.constant 0 : index
    %124 = vector.load %arg1[%c1408, %c0_55] : memref<1544x256xbf16, #tpu.memory_space<vmem>>, vector<64x16xbf16>
    %c1128 = arith.constant 1128 : index
    %c0_56 = arith.constant 0 : index
    %125 = vector.load %arg1[%c1128, %c0_56] : memref<1544x256xbf16, #tpu.memory_space<vmem>>, vector<64x64xbf16>
    %126 = arith.truncf %114 : vector<16x64xf32> to vector<16x64xbf16>
    %cst_57 = arith.constant dense<0.000000e+00> : vector<16x64xf32>
    %127 = tpu.matmul %126, %125, %cst_57 {dimension_numbers = #tpu.dot_dimension_numbers<[1], [0], [0], [1], [0, 0, 1, 1], [], []>} : vector<16x64xbf16>, vector<64x64xbf16>, vector<16x64xf32> -> vector<16x64xf32>
    %128 = arith.truncf %127 : vector<16x64xf32> to vector<16x64xbf16>
    %cst_58 = arith.constant dense<0.000000e+00> : vector<64x64xf32>
    %129 = tpu.matmul %124, %128, %cst_58 {dimension_numbers = #tpu.dot_dimension_numbers<[1], [0], [0], [1], [0, 0, 1, 1], [], []>} : vector<64x16xbf16>, vector<16x64xbf16>, vector<64x64xf32> -> vector<64x64xf32>
    %c1192 = arith.constant 1192 : index
    %c0_59 = arith.constant 0 : index
    %130 = vector.load %arg1[%c1192, %c0_59] : memref<1544x256xbf16, #tpu.memory_space<vmem>>, vector<16x64xbf16>
    %131 = arith.truncf %123 : vector<64x16xf32> to vector<64x16xbf16>
    %cst_60 = arith.constant dense<0.000000e+00> : vector<64x64xf32>
    %132 = tpu.matmul %131, %130, %cst_60 {dimension_numbers = #tpu.dot_dimension_numbers<[1], [0], [0], [1], [0, 0, 1, 1], [], []>} : vector<64x16xbf16>, vector<16x64xbf16>, vector<64x64xf32> -> vector<64x64xf32>
    %133 = arith.addf %129, %132 : vector<64x64xf32>
    %c1208 = arith.constant 1208 : index
    %c0_61 = arith.constant 0 : index
    %134 = vector.load %arg1[%c1208, %c0_61] : memref<1544x256xbf16, #tpu.memory_space<vmem>>, vector<1x64xbf16>
    %135 = arith.extf %134 : vector<1x64xbf16> to vector<1x64xf32>
    %136 = vector.broadcast %135 : vector<1x64xf32> to vector<64x64xf32>
    %137 = arith.addf %133, %136 : vector<64x64xf32>
    %cst_62 = arith.constant 0.000000e+00 : f32
    %138 = vector.broadcast %cst_62 : f32 to vector<64x64xf32>
    %139 = arith.maximumf %137, %138 : vector<64x64xf32>
    %c1216 = arith.constant 1216 : index
    %c0_63 = arith.constant 0 : index
    %140 = vector.load %arg1[%c1216, %c0_63] : memref<1544x256xbf16, #tpu.memory_space<vmem>>, vector<1x64xbf16>
    %141 = arith.extf %140 : vector<1x64xbf16> to vector<1x64xf32>
    %142 = vector.broadcast %141 : vector<1x64xf32> to vector<64x64xf32>
    %143 = arith.mulf %139, %142 : vector<64x64xf32>
    %cst_64 = arith.constant dense<0.000000e+00> : vector<64xf32>
    %144 = vector.multi_reduction <add>, %143, %cst_64 [1] : vector<64x64xf32> to vector<64xf32>
    %145 = vector.shape_cast %144 : vector<64xf32> to vector<64x1xf32>
    %c1224 = arith.constant 1224 : index
    %c0_65 = arith.constant 0 : index
    %146 = vector.load %arg1[%c1224, %c0_65] : memref<1544x256xbf16, #tpu.memory_space<vmem>>, vector<1x1xbf16>
    %147 = arith.extf %146 : vector<1x1xbf16> to vector<1x1xf32>
    %148 = vector.broadcast %147 : vector<1x1xf32> to vector<64x1xf32>
    %149 = arith.addf %145, %148 : vector<64x1xf32>
    %c1472 = arith.constant 1472 : index
    %c0_66 = arith.constant 0 : index
    %150 = vector.load %arg1[%c1472, %c0_66] : memref<1544x256xbf16, #tpu.memory_space<vmem>>, vector<4x64xbf16>
    %151 = arith.extf %150 : vector<4x64xbf16> to vector<4x64xf32>
    %c1480 = arith.constant 1480 : index
    %c0_67 = arith.constant 0 : index
    %152 = vector.load %arg1[%c1480, %c0_67] : memref<1544x256xbf16, #tpu.memory_space<vmem>>, vector<64x256xbf16>
    %153 = arith.extf %152 : vector<64x256xbf16> to vector<64x256xf32>
    %154 = vector.broadcast %149 : vector<64x1xf32> to vector<64x256xf32>
    %155 = arith.mulf %154, %153 : vector<64x256xf32>
    %cst_68 = arith.constant dense<0.000000e+00> : vector<4x256xf32>
    %156 = tpu.matmul %151, %155, %cst_68 {dimension_numbers = #tpu.dot_dimension_numbers<[1], [0], [0], [1], [0, 0, 1, 1], [], []>} : vector<4x64xf32>, vector<64x256xf32>, vector<4x256xf32> -> vector<4x256xf32>
    %c0_69 = arith.constant 0 : index
    %c0_70 = arith.constant 0 : index
    %157 = vector.load %arg2[%c0_69, %c0_70] : memref<4x256xf32, #tpu.memory_space<vmem>>, vector<4x256xf32>
    tpu.vector_store %arg2[%c0_69, %c0_70], %156 {strides = array<i32>} : memref<4x256xf32, #tpu.memory_space<vmem>>, vector<4x256xf32>,
    return
  }
}

</mosaic_0001>

<llo_original>
// kernel: squeeze.2
$region0: #{squeeze.2}
  %s0 = inlined_call_operand.vmem [shape: f32[2,256], index: 0, kind: input, shape index: {}]
  %s1 = inlined_call_operand.hbm [shape: f32[2,1,16,16], index: 1, kind: output, shape index: {}]
  $region1: #{squeeze.2} parent=0
    #allocation0 [shape = 'u8[16384]{0}', space=vmem, size = 0x4000, scoped, tag = 'operand span for operand 1']
    #allocation1 [shape = 's32[1]{0}', space=sflag, size = 0x4, scoped, tag = 'scoped memory for squeeze.2']
    #allocation2 [shape = 'u8[8192]{0}', space=vmem, size = 0x2000, scoped, tag = 'scoped mem for input reshape']
    %2 = vsyncpa [#allocation1], 0
    %s4 = ssub.s32 4, 1
    %s5 = scalar_lea.vmem %s0, 2
    %v6 = vld [vmem:[%s5] sm:%s4]
    %s7 = scalar_lea.vmem [#allocation2], 8
    %8 = vst [vmem:[%s7] sm:%s4] %v6
    %v9 = vld [vmem:[%s0] sm:%s4]
    %10 = vst [vmem:[#allocation2] sm:%s4] %v9
    %v11 = vld [vmem:[#allocation2] sm:$0x3]
    %vm12 = vcmask 130048
    %13 = vst.msk [vmem:[#allocation0] ss:$16 sm:$0x3] %vm12, %v11
    %s14 = scalar_lea.vmem [#allocation2], 8
    %v15 = vld [vmem:[%s14] sm:$0x3]
    %vm16 = vcmask 130048
    %s17 = scalar_lea.vmem [#allocation0], 8
    %18 = vst.msk [vmem:[%s17] ss:$16 sm:$0x3] %vm16, %v15
    %v19 = vld.sshfl [vmem:[#allocation2] sm:$0xff pattern:$0x99999180]
    %20 = vrot.lane.b32.xlu0 %v19, 112
    %v21 = vpop.permute.xlu0 %20
    %vm22 = vcmask 130048
    %s23 = scalar_lea.vmem [#allocation0], 1
    %24 = vst.msk [vmem:[%s23] ss:$8 sm:$0xf] %vm22, %v21
    %v25 = vld.sshfl [vmem:[#allocation2] sm:$0xff pattern:$0x99999180]
    %26 = vrot.lane.b32.xlu0 %v25, 96
    %v27 = vpop.permute.xlu0 %26
    %vm28 = vcmask 130048
    %s29 = scalar_lea.vmem [#allocation0], 2
    %30 = vst.msk [vmem:[%s29] ss:$8 sm:$0xf] %vm28, %v27
    %v31 = vld.sshfl [vmem:[#allocation2] sm:$0xff pattern:$0x99999180]
    %32 = vrot.lane.b32.xlu0 %v31, 80
    %v33 = vpop.permute.xlu0 %32
    %vm34 = vcmask 130048
    %s35 = scalar_lea.vmem [#allocation0], 3
    %36 = vst.msk [vmem:[%s35] ss:$8 sm:$0xf] %vm34, %v33
    %v37 = vld.sshfl [vmem:[#allocation2] sm:$0xff pattern:$0x99999180]
    %38 = vrot.lane.b32.xlu0 %v37, 64
    %v39 = vpop.permute.xlu0 %38
    %vm40 = vcmask 130048
    %s41 = scalar_lea.vmem [#allocation0], 4
    %42 = vst.msk [vmem:[%s41] ss:$8 sm:$0xf] %vm40, %v39
    %v43 = vld.sshfl [vmem:[#allocation2] sm:$0xff pattern:$0x99999180]
    %44 = vrot.lane.b32.xlu0 %v43, 48
    %v45 = vpop.permute.xlu0 %44
    %vm46 = vcmask 130048
    %s47 = scalar_lea.vmem [#allocation0], 5
    %48 = vst.msk [vmem:[%s47] ss:$8 sm:$0xf] %vm46, %v45
    %v49 = vld.sshfl [vmem:[#allocation2] sm:$0xff pattern:$0x99999180]
    %50 = vrot.lane.b32.xlu0 %v49, 32
    %v51 = vpop.permute.xlu0 %50
    %vm52 = vcmask 130048
    %s53 = scalar_lea.vmem [#allocation0], 6
    %54 = vst.msk [vmem:[%s53] ss:$8 sm:$0xf] %vm52, %v51
    %v55 = vld.sshfl [vmem:[#allocation2] sm:$0xff pattern:$0x99999180]
    %56 = vrot.lane.b32.xlu0 %v55, 16
    %v57 = vpop.permute.xlu0 %56
    %vm58 = vcmask 130048
    %s59 = scalar_lea.vmem [#allocation0], 7
    %60 = vst.msk [vmem:[%s59] ss:$8 sm:$0xf] %vm58, %v57
    %62 = vsyncadd [#allocation1], 0
    %s64 = sshll.u32 [#allocation0], 4
    %s65 = int_to_ptr.vmem [resolvable:$true] %s64
    %s66 = sshll.u32 %s1, 4
    %s67 = int_to_ptr.hbm [resolvable:$true] %s66
    %69 = dma.vmem_to_hbm [thread:$0]  %s65, 512, %s67, [#allocation1]
    %71 = dma.done [#allocation1], 512
    %72 = vsyncpa [#allocation1], 1

// kernel: forward.1
$region0: #{forward.1}
  #allocation0 [shape = 'u32[]', space=smem, size = 0x4, offset = 0x4, fixed_abs, tag = 'smem constant byte address 0x4 - core index']
  #allocation1 [shape = 'u32[72,128]{1,0:T(1,128)}', space=vmem, size = 0x9000, scoped, tag = 'internal scratch']
  %s0 = inlined_call_operand.vmem [shape: f32[256,4], index: 0, kind: input, shape index: {}]
  %s1 = inlined_call_operand.vmem [shape: bf16[1544,256], index: 1, kind: input, shape index: {}]
  %s2 = inlined_call_operand.vmem [shape: f32[4,256], index: 2, kind: output, shape index: {}]
  %s3 = sld [smem:[#allocation0]]
  $region18: #{forward.1} parent=0
    _
  %s5 = ssub.s32 1, %s3
  %s6 = scalar_select 0, %s5, %s3
  // Predicated region
  $region2: #{forward.1} parent=0 // pred_check
    _
  $region3: #{forward.1} parent=0 // pred_check_branch
    %8 = sbr.rel (0) target = $region5
  $region4: #{forward.1} parent=0 // pred_region
    _
  $region5: #{forward.1} parent=0 // pred_fallthru
    _
  // Predicated region
  $region6: #{forward.1} parent=0 // pred_check
    _
  $region7: #{forward.1} parent=0 // pred_check_branch
    %10 = sbr.rel (0) target = $region9
  $region8: #{forward.1} parent=0 // pred_region
    _
  $region9: #{forward.1} parent=0 // pred_fallthru
    _
  %v12 = vld [vmem:[%s0] sm:$0xff]
  %v13 = vld [vmem:[%s0 + $0x8] sm:$0xff]
  %v14 = vld [vmem:[%s0 + $0x10] sm:$0xff]
  %v15 = vld [vmem:[%s0 + $0x18] sm:$0xff]
  %v16 = vld [vmem:[%s0 + $0x20] sm:$0xff]
  %v17 = vld [vmem:[%s0 + $0x28] sm:$0xff]
  %v18 = vld [vmem:[%s0 + $0x30] sm:$0xff]
  %v19 = vld [vmem:[%s0 + $0x38] sm:$0xff]
  %v20 = vld [vmem:[%s0 + $0x40] sm:$0xff]
  %v21 = vld [vmem:[%s0 + $0x48] sm:$0xff]
  %v22 = vld [vmem:[%s0 + $0x50] sm:$0xff]
  %v23 = vld [vmem:[%s0 + $0x58] sm:$0xff]
  %v24 = vld [vmem:[%s0 + $0x60] sm:$0xff]
  %v25 = vld [vmem:[%s0 + $0x68] sm:$0xff]
  %v26 = vld [vmem:[%s0 + $0x70] sm:$0xff]
  %v27 = vld [vmem:[%s0 + $0x78] sm:$0xff]
  %v28 = vld [vmem:[%s0 + $0x80] sm:$0xff]
  %v29 = vld [vmem:[%s0 + $0x88] sm:$0xff]
  %v30 = vld [vmem:[%s0 + $0x90] sm:$0xff]
  %v31 = vld [vmem:[%s0 + $0x98] sm:$0xff]
  %v32 = vld [vmem:[%s0 + $0xa0] sm:$0xff]
  %v33 = vld [vmem:[%s0 + $0xa8] sm:$0xff]
  %v34 = vld [vmem:[%s0 + $0xb0] sm:$0xff]
  %v35 = vld [vmem:[%s0 + $0xb8] sm:$0xff]
  %v36 = vld [vmem:[%s0 + $0xc0] sm:$0xff]
  %v37 = vld [vmem:[%s0 + $0xc8] sm:$0xff]
  %v38 = vld [vmem:[%s0 + $0xd0] sm:$0xff]
  %v39 = vld [vmem:[%s0 + $0xd8] sm:$0xff]
  %v40 = vld [vmem:[%s0 + $0xe0] sm:$0xff]
  %v41 = vld [vmem:[%s0 + $0xe8] sm:$0xff]
  %v42 = vld [vmem:[%s0 + $0xf0] sm:$0xff]
  %v43 = vld [vmem:[%s0 + $0xf8] sm:$0xff]
  %v44 = vld [vmem:[%s1] sm:$0x3]
  %v45 = vpack.c.bf16 %v13, %v12
  %v46 = vpack.c.bf16 %v15, %v14
  %v47 = vpack.c.bf16 %v17, %v16
  %v48 = vpack.c.bf16 %v19, %v18
  %v49 = vpack.c.bf16 %v21, %v20
  %v50 = vpack.c.bf16 %v23, %v22
  %v51 = vpack.c.bf16 %v25, %v24
  %v52 = vpack.c.bf16 %v27, %v26
  %v53 = vpack.c.bf16 %v29, %v28
  %v54 = vpack.c.bf16 %v31, %v30
  %v55 = vpack.c.bf16 %v33, %v32
  %v56 = vpack.c.bf16 %v35, %v34
  %v57 = vpack.c.bf16 %v37, %v36
  %v58 = vpack.c.bf16 %v39, %v38
  %v59 = vpack.c.bf16 %v41, %v40
  %v60 = vpack.c.bf16 %v43, %v42
  %v61 = vld [vmem:[%s1 + $0x8] sm:$0x1]
  %v62 = vunpack.c.l.bf16 %v61
  %v63 = vperm.slane %v62, 0
  %vm64 = vcmask 31744
  %v66 = vsel %vm64, %v45, 0
  %v69 = vsel %vm64, %v46, 0
  %v72 = vsel %vm64, %v47, 0
  %v75 = vsel %vm64, %v48, 0
  %v78 = vsel %vm64, %v49, 0
  %v81 = vsel %vm64, %v50, 0
  %v84 = vsel %vm64, %v51, 0
  %v87 = vsel %vm64, %v52, 0
  %v90 = vsel %vm64, %v53, 0
  %v93 = vsel %vm64, %v54, 0
  %v96 = vsel %vm64, %v55, 0
  %v99 = vsel %vm64, %v56, 0
  %v102 = vsel %vm64, %v57, 0
  %v105 = vsel %vm64, %v58, 0
  %v108 = vsel %vm64, %v59, 0
  %v111 = vsel %vm64, %v60, 0
  %vm113 = vcmask 1041408
  %v115 = vsel %vm113, %v44, 0
  %117 = vmatpush.bf16.msra.mxu0 0
  %118 = vmatpush.bf16.msra.mxu0 0
  %119 = vmatpush.bf16.msra.mxu0 0
  %120 = vmatpush.bf16.msra.mxu0 0
  %121 = vmatpush.bf16.msra.mxu0 0
  %122 = vmatpush.bf16.msra.mxu0 0
  %123 = vmatpush.bf16.msra.mxu0 0
  %124 = vmatpush.bf16.msra.mxu0 %v115
  %125 = vmatmul.bf16.gmra.mxu0 %v66
  %v126 = vpop.f32.mrf.mxu0
  %v127 = vadd.f32 %v63, %v126
  %v128 = vpop.f32.mrf.mxu0
  %v129 = vadd.f32 %v63, %v128
  %130 = vmatmul.bf16.gmra.mxu0 %v69
  %v131 = vpop.f32.mrf.mxu0
  %v132 = vadd.f32 %v63, %v131
  %v133 = vpop.f32.mrf.mxu0
  %v134 = vadd.f32 %v63, %v133
  %135 = vmatmul.bf16.gmra.mxu0 %v72
  %v136 = vpop.f32.mrf.mxu0
  %v137 = vadd.f32 %v63, %v136
  %v138 = vpop.f32.mrf.mxu0
  %v139 = vadd.f32 %v63, %v138
  %140 = vmatmul.bf16.gmra.mxu0 %v75
  %v141 = vpop.f32.mrf.mxu0
  %v142 = vadd.f32 %v63, %v141
  %v143 = vpop.f32.mrf.mxu0
  %v144 = vadd.f32 %v63, %v143
  %145 = vmatmul.bf16.gmra.mxu0 %v78
  %v146 = vpop.f32.mrf.mxu0
  %v147 = vadd.f32 %v63, %v146
  %v148 = vpop.f32.mrf.mxu0
  %v149 = vadd.f32 %v63, %v148
  %150 = vmatmul.bf16.gmra.mxu0 %v81
  %v151 = vpop.f32.mrf.mxu0
  %v152 = vadd.f32 %v63, %v151
  %v153 = vpop.f32.mrf.mxu0
  %v154 = vadd.f32 %v63, %v153
  %155 = vmatmul.bf16.gmra.mxu0 %v84
  %v156 = vpop.f32.mrf.mxu0
  %v157 = vadd.f32 %v63, %v156
  %v158 = vpop.f32.mrf.mxu0
  %v159 = vadd.f32 %v63, %v158
  %160 = vmatmul.bf16.gmra.mxu0 %v87
  %v161 = vpop.f32.mrf.mxu0
  %v162 = vadd.f32 %v63, %v161
  %v163 = vpop.f32.mrf.mxu0
  %v164 = vadd.f32 %v63, %v163
  %165 = vmatmul.bf16.gmra.mxu0 %v90
  %v166 = vpop.f32.mrf.mxu0
  %v167 = vadd.f32 %v63, %v166
  %v168 = vpop.f32.mrf.mxu0
  %v169 = vadd.f32 %v63, %v168
  %170 = vmatmul.bf16.gmra.mxu0 %v93
  %v171 = vpop.f32.mrf.mxu0
  %v172 = vadd.f32 %v63, %v171
  %v173 = vpop.f32.mrf.mxu0
  %v174 = vadd.f32 %v63, %v173
  %175 = vmatmul.bf16.gmra.mxu0 %v96
  %v176 = vpop.f32.mrf.mxu0
  %v177 = vadd.f32 %v63, %v176
  %v178 = vpop.f32.mrf.mxu0
  %v179 = vadd.f32 %v63, %v178
  %180 = vmatmul.bf16.gmra.mxu0 %v99
  %v181 = vpop.f32.mrf.mxu0
  %v182 = vadd.f32 %v63, %v181
  %v183 = vpop.f32.mrf.mxu0
  %v184 = vadd.f32 %v63, %v183
  %185 = vmatmul.bf16.gmra.mxu0 %v102
  %v186 = vpop.f32.mrf.mxu0
  %v187 = vadd.f32 %v63, %v186
  %v188 = vpop.f32.mrf.mxu0
  %v189 = vadd.f32 %v63, %v188
  %190 = vmatmul.bf16.gmra.mxu0 %v105
  %v191 = vpop.f32.mrf.mxu0
  %v192 = vadd.f32 %v63, %v191
  %v193 = vpop.f32.mrf.mxu0
  %v194 = vadd.f32 %v63, %v193
  %195 = vmatmul.bf16.gmra.mxu0 %v108
  %v196 = vpop.f32.mrf.mxu0
  %v197 = vadd.f32 %v63, %v196
  %v198 = vpop.f32.mrf.mxu0
  %v199 = vadd.f32 %v63, %v198
  %200 = vmatmul.bf16.gmra.mxu0 %v111
  %v201 = vpop.f32.mrf.mxu0
  %v202 = vadd.f32 %v63, %v201
  %v203 = vpop.f32.mrf.mxu0
  %v204 = vadd.f32 %v63, %v203
  %205 = vdwg.mxu0
  %v206 = vmax.f32 %v127, 0.0
  %v207 = vmax.f32 %v129, 0.0
  %v208 = vmax.f32 %v132, 0.0
  %v209 = vmax.f32 %v134, 0.0
  %v210 = vmax.f32 %v137, 0.0
  %v211 = vmax.f32 %v139, 0.0
  %v212 = vmax.f32 %v142, 0.0
  %v213 = vmax.f32 %v144, 0.0
  %v214 = vmax.f32 %v147, 0.0
  %v215 = vmax.f32 %v149, 0.0
  %v216 = vmax.f32 %v152, 0.0
  %v217 = vmax.f32 %v154, 0.0
  %v218 = vmax.f32 %v157, 0.0
  %v219 = vmax.f32 %v159, 0.0
  %v220 = vmax.f32 %v162, 0.0
  %v221 = vmax.f32 %v164, 0.0
  %v222 = vmax.f32 %v167, 0.0
  %v223 = vmax.f32 %v169, 0.0
  %v224 = vmax.f32 %v172, 0.0
  %v225 = vmax.f32 %v174, 0.0
  %v226 = vmax.f32 %v177, 0.0
  %v227 = vmax.f32 %v179, 0.0
  %v228 = vmax.f32 %v182, 0.0
  %v229 = vmax.f32 %v184, 0.0
  %v230 = vmax.f32 %v187, 0.0
  %v231 = vmax.f32 %v189, 0.0
  %v232 = vmax.f32 %v192, 0.0
  %v233 = vmax.f32 %v194, 0.0
  %v234 = vmax.f32 %v197, 0.0
  %v235 = vmax.f32 %v199, 0.0
  %v236 = vmax.f32 %v202, 0.0
  %v237 = vmax.f32 %v204, 0.0
  %v238 = vld [vmem:[%s1 + $0x4d0] sm:$0xff]
  %v239 = vld [vmem:[%s1 + $0x4d8] sm:$0xff]
  %v240 = vld [vmem:[%s1 + $0x4e0] sm:$0xff]
  %v241 = vld [vmem:[%s1 + $0x4e8] sm:$0xff]
  %v242 = vld [vmem:[%s1 + $0x4f0] sm:$0xff]
  %v243 = vld [vmem:[%s1 + $0x4f8] sm:$0xff]
  %v244 = vld [vmem:[%s1 + $0x500] sm:$0xff]
  %v245 = vld [vmem:[%s1 + $0x508] sm:$0xff]
  %v246 = vpack.c.bf16 %v207, %v206
  %v247 = vpack.c.bf16 %v209, %v208
  %v248 = vpack.c.bf16 %v211, %v210
  %v249 = vpack.c.bf16 %v213, %v212
  %v250 = vpack.c.bf16 %v215, %v214
  %v251 = vpack.c.bf16 %v217, %v216
  %v252 = vpack.c.bf16 %v219, %v218
  %v253 = vpack.c.bf16 %v221, %v220
  %v254 = vpack.c.bf16 %v223, %v222
  %v255 = vpack.c.bf16 %v225, %v224
  %v256 = vpack.c.bf16 %v227, %v226
  %v257 = vpack.c.bf16 %v229, %v228
  %v258 = vpack.c.bf16 %v231, %v230
  %v259 = vpack.c.bf16 %v233, %v232
  %v260 = vpack.c.bf16 %v235, %v234
  %v261 = vpack.c.bf16 %v237, %v236
  %v270 = vunpack.c.l.b16 %v238
  %v271 = vunpack.c.h.b16 %v238
  %v272 = vunpack.c.l.b16 %v239
  %v273 = vunpack.c.h.b16 %v239
  %v274 = vunpack.c.l.b16 %v240
  %v275 = vunpack.c.h.b16 %v240
  %v276 = vunpack.c.l.b16 %v241
  %v277 = vunpack.c.h.b16 %v241
  %v278 = vunpack.c.l.b16 %v242
  %v279 = vunpack.c.h.b16 %v242
  %v280 = vunpack.c.l.b16 %v243
  %v281 = vunpack.c.h.b16 %v243
  %v282 = vunpack.c.l.b16 %v244
  %v283 = vunpack.c.h.b16 %v244
  %v284 = vunpack.c.l.b16 %v245
  %v285 = vunpack.c.h.b16 %v245
  %v286 = vpack.c.b16 %v272, %v270
  %v287 = vpack.c.b16 %v273, %v271
  %v288 = vpack.c.b16 %v276, %v274
  %v289 = vpack.c.b16 %v277, %v275
  %v290 = vpack.c.b16 %v280, %v278
  %v291 = vpack.c.b16 %v281, %v279
  %v292 = vpack.c.b16 %v284, %v282
  %v293 = vpack.c.b16 %v285, %v283
  %302 = vmatpush.bf16.msra.mxu0 %v253
  %303 = vmatpush.bf16.msra.mxu0 %v252
  %304 = vmatpush.bf16.msra.mxu0 %v251
  %305 = vmatpush.bf16.msra.mxu0 %v250
  %306 = vmatpush.bf16.msra.mxu0 %v249
  %307 = vmatpush.bf16.msra.mxu0 %v248
  %308 = vmatpush.bf16.msra.mxu0 %v247
  %309 = vmatpush.bf16.msra.mxu0 %v246
  %310 = vmatmul.bf16.gmra.mxu0 %v286
  %v311 = vpop.f32.mrf.mxu0
  %v312 = vadd.f32 0.0, %v311
  %v313 = vpop.f32.mrf.mxu0
  %v314 = vadd.f32 0.0, %v313
  %315 = vmatmul.bf16.gmra.mxu0 %v288
  %v316 = vpop.f32.mrf.mxu0
  %v317 = vadd.f32 0.0, %v316
  %v318 = vpop.f32.mrf.mxu0
  %v319 = vadd.f32 0.0, %v318
  %320 = vmatmul.bf16.gmra.mxu0 %v290
  %v321 = vpop.f32.mrf.mxu0
  %v322 = vadd.f32 0.0, %v321
  %v323 = vpop.f32.mrf.mxu0
  %v324 = vadd.f32 0.0, %v323
  %325 = vmatmul.bf16.gmra.mxu0 %v292
  %v326 = vpop.f32.mrf.mxu0
  %v327 = vadd.f32 0.0, %v326
  %v328 = vpop.f32.mrf.mxu0
  %v329 = vadd.f32 0.0, %v328
  %330 = vdwg.mxu0
  %331 = vmatpush.bf16.msra.mxu0 %v261
  %332 = vmatpush.bf16.msra.mxu0 %v260
  %333 = vmatpush.bf16.msra.mxu0 %v259
  %334 = vmatpush.bf16.msra.mxu0 %v258
  %335 = vmatpush.bf16.msra.mxu0 %v257
  %336 = vmatpush.bf16.msra.mxu0 %v256
  %337 = vmatpush.bf16.msra.mxu0 %v255
  %338 = vmatpush.bf16.msra.mxu0 %v254
  %339 = vmatmul.bf16.gmra.mxu0 %v287
  %v340 = vpop.f32.mrf.mxu0
  %v341 = vadd.f32 %v312, %v340
  %v342 = vpop.f32.mrf.mxu0
  %v343 = vadd.f32 %v314, %v342
  %344 = vmatmul.bf16.gmra.mxu0 %v289
  %v345 = vpop.f32.mrf.mxu0
  %v346 = vadd.f32 %v317, %v345
  %v347 = vpop.f32.mrf.mxu0
  %v348 = vadd.f32 %v319, %v347
  %349 = vmatmul.bf16.gmra.mxu0 %v291
  %v350 = vpop.f32.mrf.mxu0
  %v351 = vadd.f32 %v322, %v350
  %v352 = vpop.f32.mrf.mxu0
  %v353 = vadd.f32 %v324, %v352
  %354 = vmatmul.bf16.gmra.mxu0 %v293
  %v355 = vpop.f32.mrf.mxu0
  %v356 = vadd.f32 %v327, %v355
  %v357 = vpop.f32.mrf.mxu0
  %v358 = vadd.f32 %v329, %v357
  %359 = vdwg.mxu0
  %v360 = vld [vmem:[%s1 + $0x10] sm:$0xf]
  %v361 = vpack.c.bf16 %v343, %v341
  %v362 = vpack.c.bf16 %v348, %v346
  %v363 = vpack.c.bf16 %v353, %v351
  %v364 = vpack.c.bf16 %v358, %v356
  %v365 = vld [vmem:[%s1 + $0x18] sm:$0x1]
  %v366 = vunpack.c.l.bf16 %v365
  %v367 = vperm.slane %v366, 0
  %vm368 = vcmask 64512
  %v370 = vsel %vm368, %v361, 0
  %v373 = vsel %vm368, %v362, 0
  %v376 = vsel %vm368, %v363, 0
  %v379 = vsel %vm368, %v364, 0
  %vm381 = vcmask 1043456
  %v383 = vsel %vm381, %v360, 0
  %385 = vmatpush.bf16.msra.mxu0 0
  %386 = vmatpush.bf16.msra.mxu0 0
  %387 = vmatpush.bf16.msra.mxu0 0
  %388 = vmatpush.bf16.msra.mxu0 0
  %389 = vmatpush.bf16.msra.mxu0 0
  %390 = vmatpush.bf16.msra.mxu0 0
  %391 = vmatpush.bf16.msra.mxu0 0
  %392 = vmatpush.bf16.msra.mxu0 %v383
  %393 = vmatmul.bf16.gmra.mxu0 %v370
  %v394 = vpop.f32.mrf.mxu0
  %v395 = vadd.f32 %v367, %v394
  %v396 = vpop.f32.mrf.mxu0
  %v397 = vadd.f32 %v367, %v396
  %398 = vmatmul.bf16.gmra.mxu0 %v373
  %v399 = vpop.f32.mrf.mxu0
  %v400 = vadd.f32 %v367, %v399
  %v401 = vpop.f32.mrf.mxu0
  %v402 = vadd.f32 %v367, %v401
  %403 = vmatmul.bf16.gmra.mxu0 %v376
  %v404 = vpop.f32.mrf.mxu0
  %v405 = vadd.f32 %v367, %v404
  %v406 = vpop.f32.mrf.mxu0
  %v407 = vadd.f32 %v367, %v406
  %408 = vmatmul.bf16.gmra.mxu0 %v379
  %v409 = vpop.f32.mrf.mxu0
  %v410 = vadd.f32 %v367, %v409
  %v411 = vpop.f32.mrf.mxu0
  %v412 = vadd.f32 %v367, %v411
  %413 = vdwg.mxu0
  %v414 = vmax.f32 %v395, 0.0
  %v415 = vmax.f32 %v397, 0.0
  %v416 = vmax.f32 %v400, 0.0
  %v417 = vmax.f32 %v402, 0.0
  %v418 = vmax.f32 %v405, 0.0
  %v419 = vmax.f32 %v407, 0.0
  %v420 = vmax.f32 %v410, 0.0
  %v421 = vmax.f32 %v412, 0.0
  %v422 = vld [vmem:[%s1 + $0x20] sm:$0xf]
  %v423 = vld [vmem:[%s1 + $0x28] sm:$0xf]
  %v424 = vld [vmem:[%s1 + $0x30] sm:$0xf]
  %v425 = vld [vmem:[%s1 + $0x38] sm:$0xf]
  %v426 = vpack.c.bf16 %v415, %v414
  %v427 = vpack.c.bf16 %v417, %v416
  %v428 = vpack.c.bf16 %v419, %v418
  %v429 = vpack.c.bf16 %v421, %v420
  %v430 = vld [vmem:[%s1 + $0x40] sm:$0x1]
  %v431 = vunpack.c.l.bf16 %v430
  %v432 = vperm.slane %v431, 0
  %v437 = vunpack.c.l.b16 %v422
  %v438 = vunpack.c.l.b16 %v423
  %v439 = vunpack.c.l.b16 %v424
  %v440 = vunpack.c.l.b16 %v425
  %v441 = vpack.c.b16 %v438, %v437
  %v442 = vpack.c.b16 %v440, %v439
  %vm445 = vcmask 261120
  %v447 = vsel %vm445, %v426, 0
  %v450 = vsel %vm445, %v427, 0
  %v453 = vsel %vm445, %v428, 0
  %v456 = vsel %vm445, %v429, 0
  %458 = vmatpush.bf16.msra.mxu0 0
  %459 = vmatpush.bf16.msra.mxu0 0
  %460 = vmatpush.bf16.msra.mxu0 0
  %461 = vmatpush.bf16.msra.mxu0 0
  %462 = vmatpush.bf16.msra.mxu0 0
  %463 = vmatpush.bf16.msra.mxu0 0
  %464 = vmatpush.bf16.msra.mxu0 %v442
  %465 = vmatpush.bf16.msra.mxu0 %v441
  %466 = vmatmul.bf16.gmra.mxu0 %v447
  %v467 = vpop.f32.mrf.mxu0
  %v468 = vadd.f32 %v432, %v467
  %v469 = vpop.f32.mrf.mxu0
  %v470 = vadd.f32 %v432, %v469
  %471 = vmatmul.bf16.gmra.mxu0 %v450
  %v472 = vpop.f32.mrf.mxu0
  %v473 = vadd.f32 %v432, %v472
  %v474 = vpop.f32.mrf.mxu0
  %v475 = vadd.f32 %v432, %v474
  %476 = vmatmul.bf16.gmra.mxu0 %v453
  %v477 = vpop.f32.mrf.mxu0
  %v478 = vadd.f32 %v432, %v477
  %v479 = vpop.f32.mrf.mxu0
  %v480 = vadd.f32 %v432, %v479
  %481 = vmatmul.bf16.gmra.mxu0 %v456
  %v482 = vpop.f32.mrf.mxu0
  %v483 = vadd.f32 %v432, %v482
  %v484 = vpop.f32.mrf.mxu0
  %v485 = vadd.f32 %v432, %v484
  %486 = vdwg.mxu0
  %v487 = vmax.f32 %v468, 0.0
  %v488 = vmax.f32 %v470, 0.0
  %v489 = vmax.f32 %v473, 0.0
  %v490 = vmax.f32 %v475, 0.0
  %v491 = vmax.f32 %v478, 0.0
  %v492 = vmax.f32 %v480, 0.0
  %v493 = vmax.f32 %v483, 0.0
  %v494 = vmax.f32 %v485, 0.0
  %v495 = vld [vmem:[%s1 + $0x510] sm:$0xf]
  %v496 = vld [vmem:[%s1 + $0x518] sm:$0xf]
  %v497 = vpack.c.bf16 %v488, %v487
  %v498 = vpack.c.bf16 %v490, %v489
  %v499 = vpack.c.bf16 %v492, %v491
  %v500 = vpack.c.bf16 %v494, %v493
  %v503 = vunpack.c.l.b16 %v495
  %v504 = vunpack.c.l.b16 %v496
  %v505 = vpack.c.b16 %v504, %v503
  %vm506 = vcmask 523264
  %v508 = vsel %vm506, %v505, 0
  %510 = vmatpush.bf16.msra.mxu0 0
  %511 = vmatpush.bf16.msra.mxu0 0
  %512 = vmatpush.bf16.msra.mxu0 0
  %513 = vmatpush.bf16.msra.mxu0 0
  %514 = vmatpush.bf16.msra.mxu0 %v500
  %515 = vmatpush.bf16.msra.mxu0 %v499
  %516 = vmatpush.bf16.msra.mxu0 %v498
  %517 = vmatpush.bf16.msra.mxu0 %v497
  %518 = vmatmul.bf16.gmra.mxu0 %v508
  %v519 = vpop.f32.mrf.mxu0
  %v520 = vadd.f32 0.0, %v519
  %v521 = vpop.f32.mrf.mxu0
  %v522 = vadd.f32 0.0, %v521
  %523 = vdwg.mxu0
  %v524 = vld [vmem:[%s1 + $0x48] sm:$0xf]
  %v525 = vld [vmem:[%s1 + $0x50] sm:$0xf]
  %v526 = vld [vmem:[%s1 + $0x58] sm:$0xf]
  %v527 = vld [vmem:[%s1 + $0x60] sm:$0xf]
  %v528 = vld [vmem:[%s1 + $0x68] sm:$0xf]
  %v529 = vld [vmem:[%s1 + $0x70] sm:$0xf]
  %v530 = vld [vmem:[%s1 + $0x78] sm:$0xf]
  %v531 = vld [vmem:[%s1 + $0x80] sm:$0xf]
  %v532 = vpack.c.bf16 %v522, %v520
  %v533 = vld [vmem:[%s1 + $0x88] sm:$0x1]
  %v534 = vunpack.c.l.bf16 %v533
  %v535 = vperm.slane %v534, 0
  %v544 = vunpack.c.l.b16 %v524
  %v545 = vunpack.c.l.b16 %v525
  %v546 = vunpack.c.l.b16 %v526
  %v547 = vunpack.c.l.b16 %v527
  %v548 = vunpack.c.l.b16 %v528
  %v549 = vunpack.c.l.b16 %v529
  %v550 = vunpack.c.l.b16 %v530
  %v551 = vunpack.c.l.b16 %v531
  %v552 = vpack.c.b16 %v545, %v544
  %v553 = vpack.c.b16 %v547, %v546
  %v554 = vpack.c.b16 %v549, %v548
  %v555 = vpack.c.b16 %v551, %v550
  %v561 = vsel %vm506, %v532, 0
  %563 = vmatpush.bf16.msra.mxu0 0
  %564 = vmatpush.bf16.msra.mxu0 0
  %565 = vmatpush.bf16.msra.mxu0 0
  %566 = vmatpush.bf16.msra.mxu0 0
  %567 = vmatpush.bf16.msra.mxu0 %v555
  %568 = vmatpush.bf16.msra.mxu0 %v554
  %569 = vmatpush.bf16.msra.mxu0 %v553
  %570 = vmatpush.bf16.msra.mxu0 %v552
  %571 = vmatmul.bf16.gmra.mxu0 %v561
  %v572 = vpop.f32.mrf.mxu0
  %v573 = vadd.f32 %v535, %v572
  %v574 = vpop.f32.mrf.mxu0
  %v575 = vadd.f32 %v535, %v574
  %576 = vdwg.mxu0
  %v577 = vmax.f32 %v573, 0.0
  %v578 = vmax.f32 %v575, 0.0
  %v579 = vld [vmem:[%s1 + $0x90] sm:$0xf]
  %v580 = vld [vmem:[%s1 + $0x98] sm:$0xf]
  %v581 = vld [vmem:[%s1 + $0xa0] sm:$0xf]
  %v582 = vld [vmem:[%s1 + $0xa8] sm:$0xf]
  %v583 = vld [vmem:[%s1 + $0xb0] sm:$0xf]
  %v584 = vld [vmem:[%s1 + $0xb8] sm:$0xf]
  %v585 = vld [vmem:[%s1 + $0xc0] sm:$0xf]
  %v586 = vld [vmem:[%s1 + $0xc8] sm:$0xf]
  %v587 = vld [vmem:[%s1 + $0xd0] sm:$0xf]
  %v588 = vld [vmem:[%s1 + $0xd8] sm:$0xf]
  %v589 = vld [vmem:[%s1 + $0xe0] sm:$0xf]
  %v590 = vld [vmem:[%s1 + $0xe8] sm:$0xf]
  %v591 = vpack.c.bf16 %v578, %v577
  %v592 = vld [vmem:[%s1 + $0xf0] sm:$0x1]
  %v593 = vunpack.c.l.bf16 %v592
  %v594 = vperm.slane %v593, 0
  %v607 = vunpack.c.l.b16 %v579
  %v608 = vunpack.c.l.b16 %v580
  %v609 = vunpack.c.l.b16 %v581
  %v610 = vunpack.c.l.b16 %v582
  %v611 = vunpack.c.l.b16 %v583
  %v612 = vunpack.c.l.b16 %v584
  %v613 = vunpack.c.l.b16 %v585
  %v614 = vunpack.c.l.b16 %v586
  %v615 = vunpack.c.l.b16 %v587
  %v616 = vunpack.c.l.b16 %v588
  %v617 = vunpack.c.l.b16 %v589
  %v618 = vunpack.c.l.b16 %v590
  %v619 = vpack.c.b16 %v608, %v607
  %v620 = vpack.c.b16 %v610, %v609
  %v621 = vpack.c.b16 %v612, %v611
  %v622 = vpack.c.b16 %v614, %v613
  %v623 = vpack.c.b16 %v616, %v615
  %v624 = vpack.c.b16 %v618, %v617
  %vm631 = vcmask 785408
  %v633 = vsel %vm631, %v591, 0
  %635 = vmatpush.bf16.msra.mxu0 0
  %636 = vmatpush.bf16.msra.mxu0 0
  %637 = vmatpush.bf16.msra.mxu0 %v624
  %638 = vmatpush.bf16.msra.mxu0 %v623
  %639 = vmatpush.bf16.msra.mxu0 %v622
  %640 = vmatpush.bf16.msra.mxu0 %v621
  %641 = vmatpush.bf16.msra.mxu0 %v620
  %642 = vmatpush.bf16.msra.mxu0 %v619
  %643 = vmatmul.bf16.gmra.mxu0 %v633
  %v644 = vpop.f32.mrf.mxu0
  %v645 = vadd.f32 %v594, %v644
  %v646 = vpop.f32.mrf.mxu0
  %v647 = vadd.f32 %v594, %v646
  %648 = vdwg.mxu0
  %v649 = vmax.f32 %v645, 0.0
  %v650 = vmax.f32 %v647, 0.0
  %v651 = vld [vmem:[%s1 + $0x520] sm:$0x3]
  %v652 = vpack.c.bf16 %v650, %v649
  %vm653 = vcmask 130048
  %v655 = vsel %vm653, %v651, 0
  %657 = vmatpush.bf16.msra.mxu0 0
  %658 = vmatpush.bf16.msra.mxu0 0
  %659 = vmatpush.bf16.msra.mxu0 0
  %660 = vmatpush.bf16.msra.mxu0 0
  %661 = vmatpush.bf16.msra.mxu0 0
  %662 = vmatpush.bf16.msra.mxu0 0
  %663 = vmatpush.bf16.msra.mxu0 0
  %664 = vmatpush.bf16.msra.mxu0 %v652
  %665 = vmatmul.bf16.gmra.mxu0 %v655
  %v666 = vpop.f32.mrf.mxu0
  %v667 = vadd.f32 0.0, %v666
  %v668 = vpop.f32.mrf.mxu0
  %669 = vdwg.mxu0
  %v670 = vld [vmem:[%s1 + $0xf8] sm:$0xff]
  %v671 = vld [vmem:[%s1 + $0x100] sm:$0xff]
  %v672 = vld [vmem:[%s1 + $0x108] sm:$0xff]
  %v673 = vld [vmem:[%s1 + $0x110] sm:$0xff]
  %v674 = vld [vmem:[%s1 + $0x118] sm:$0xff]
  %v675 = vld [vmem:[%s1 + $0x120] sm:$0xff]
  %v676 = vld [vmem:[%s1 + $0x128] sm:$0xff]
  %v677 = vld [vmem:[%s1 + $0x130] sm:$0xff]
  %v678 = vld [vmem:[%s1 + $0x138] sm:$0xff]
  %v679 = vld [vmem:[%s1 + $0x140] sm:$0xff]
  %v680 = vld [vmem:[%s1 + $0x148] sm:$0xff]
  %v681 = vld [vmem:[%s1 + $0x150] sm:$0xff]
  %v682 = vld [vmem:[%s1 + $0x158] sm:$0xff]
  %v683 = vld [vmem:[%s1 + $0x160] sm:$0xff]
  %v684 = vld [vmem:[%s1 + $0x168] sm:$0xff]
  %v685 = vld [vmem:[%s1 + $0x170] sm:$0xff]
  %v686 = vpack.c.bf16 %v667, %v667
  %v687 = vld [vmem:[%s1 + $0x178] sm:$0x11]
  %v688 = vunpack.c.l.bf16 %v687
  %v689 = vunpack.c.h.bf16 %v687
  %v690 = vperm.slane %v688, 0
  %v691 = vperm.slane %v689, 0
  %v708 = vunpack.c.l.b16 %v670
  %v709 = vunpack.c.h.b16 %v670
  %v710 = vunpack.c.l.b16 %v671
  %v711 = vunpack.c.h.b16 %v671
  %v712 = vunpack.c.l.b16 %v672
  %v713 = vunpack.c.h.b16 %v672
  %v714 = vunpack.c.l.b16 %v673
  %v715 = vunpack.c.h.b16 %v673
  %v716 = vunpack.c.l.b16 %v674
  %v717 = vunpack.c.h.b16 %v674
  %v718 = vunpack.c.l.b16 %v675
  %v719 = vunpack.c.h.b16 %v675
  %v720 = vunpack.c.l.b16 %v676
  %v721 = vunpack.c.h.b16 %v676
  %v722 = vunpack.c.l.b16 %v677
  %v723 = vunpack.c.h.b16 %v677
  %v724 = vunpack.c.l.b16 %v678
  %v725 = vunpack.c.h.b16 %v678
  %v726 = vunpack.c.l.b16 %v679
  %v727 = vunpack.c.h.b16 %v679
  %v728 = vunpack.c.l.b16 %v680
  %v729 = vunpack.c.h.b16 %v680
  %v730 = vunpack.c.l.b16 %v681
  %v731 = vunpack.c.h.b16 %v681
  %v732 = vunpack.c.l.b16 %v682
  %v733 = vunpack.c.h.b16 %v682
  %v734 = vunpack.c.l.b16 %v683
  %v735 = vunpack.c.h.b16 %v683
  %v736 = vunpack.c.l.b16 %v684
  %v737 = vunpack.c.h.b16 %v684
  %v738 = vunpack.c.l.b16 %v685
  %v739 = vunpack.c.h.b16 %v685
  %v740 = vpack.c.b16 %v710, %v708
  %v741 = vpack.c.b16 %v711, %v709
  %v742 = vpack.c.b16 %v714, %v712
  %v743 = vpack.c.b16 %v715, %v713
  %v744 = vpack.c.b16 %v718, %v716
  %v745 = vpack.c.b16 %v719, %v717
  %v746 = vpack.c.b16 %v722, %v720
  %v747 = vpack.c.b16 %v723, %v721
  %v748 = vpack.c.b16 %v726, %v724
  %v749 = vpack.c.b16 %v727, %v725
  %v750 = vpack.c.b16 %v730, %v728
  %v751 = vpack.c.b16 %v731, %v729
  %v752 = vpack.c.b16 %v734, %v732
  %v753 = vpack.c.b16 %v735, %v733
  %v754 = vpack.c.b16 %v738, %v736
  %v755 = vpack.c.b16 %v739, %v737
  %772 = vmatpush.bf16.msra.mxu0 %v754
  %773 = vmatpush.bf16.msra.mxu0 %v752
  %774 = vmatpush.bf16.msra.mxu0 %v750
  %775 = vmatpush.bf16.msra.mxu0 %v748
  %776 = vmatpush.bf16.msra.mxu0 %v746
  %777 = vmatpush.bf16.msra.mxu0 %v744
  %778 = vmatpush.bf16.msra.mxu0 %v742
  %779 = vmatpush.bf16.msra.mxu0 %v740
  %780 = vmatmul.bf16.gmra.mxu0 %v686
  %v781 = vpop.f32.mrf.mxu0
  %v782 = vadd.f32 %v690, %v781
  %v783 = vpop.f32.mrf.mxu0
  %784 = vdwg.mxu0
  %785 = vmatpush.bf16.msra.mxu0 %v755
  %786 = vmatpush.bf16.msra.mxu0 %v753
  %787 = vmatpush.bf16.msra.mxu0 %v751
  %788 = vmatpush.bf16.msra.mxu0 %v749
  %789 = vmatpush.bf16.msra.mxu0 %v747
  %790 = vmatpush.bf16.msra.mxu0 %v745
  %791 = vmatpush.bf16.msra.mxu0 %v743
  %792 = vmatpush.bf16.msra.mxu0 %v741
  %793 = vmatmul.bf16.gmra.mxu0 %v686
  %v794 = vpop.f32.mrf.mxu0
  %v795 = vadd.f32 %v691, %v794
  %v796 = vpop.f32.mrf.mxu0
  %797 = vdwg.mxu0
  %v798 = vtanh.pop %v782
  %v799 = vtanh.pop %v795
  %v800 = vld [vmem:[%s1 + $0x180] sm:$0xf]
  %v801 = vld [vmem:[%s1 + $0x188] sm:$0xf]
  %v802 = vld [vmem:[%s1 + $0x190] sm:$0xf]
  %v803 = vld [vmem:[%s1 + $0x198] sm:$0xf]
  %v804 = vld [vmem:[%s1 + $0x1a0] sm:$0xf]
  %v805 = vld [vmem:[%s1 + $0x1a8] sm:$0xf]
  %v806 = vld [vmem:[%s1 + $0x1b0] sm:$0xf]
  %v807 = vld [vmem:[%s1 + $0x1b8] sm:$0xf]
  %v808 = vld [vmem:[%s1 + $0x1c0] sm:$0xf]
  %v809 = vld [vmem:[%s1 + $0x1c8] sm:$0xf]
  %v810 = vld [vmem:[%s1 + $0x1d0] sm:$0xf]
  %v811 = vld [vmem:[%s1 + $0x1d8] sm:$0xf]
  %v812 = vld [vmem:[%s1 + $0x1e0] sm:$0xf]
  %v813 = vld [vmem:[%s1 + $0x1e8] sm:$0xf]
  %v814 = vld [vmem:[%s1 + $0x1f0] sm:$0xf]
  %v815 = vld [vmem:[%s1 + $0x1f8] sm:$0xf]
  %v816 = vld [vmem:[%s1 + $0x200] sm:$0xf]
  %v817 = vld [vmem:[%s1 + $0x208] sm:$0xf]
  %v818 = vld [vmem:[%s1 + $0x210] sm:$0xf]
  %v819 = vld [vmem:[%s1 + $0x218] sm:$0xf]
  %v820 = vld [vmem:[%s1 + $0x220] sm:$0xf]
  %v821 = vld [vmem:[%s1 + $0x228] sm:$0xf]
  %v822 = vld [vmem:[%s1 + $0x230] sm:$0xf]
  %v823 = vld [vmem:[%s1 + $0x238] sm:$0xf]
  %v824 = vld [vmem:[%s1 + $0x240] sm:$0xf]
  %v825 = vld [vmem:[%s1 + $0x248] sm:$0xf]
  %v826 = vld [vmem:[%s1 + $0x250] sm:$0xf]
  %v827 = vld [vmem:[%s1 + $0x258] sm:$0xf]
  %v828 = vld [vmem:[%s1 + $0x260] sm:$0xf]
  %v829 = vld [vmem:[%s1 + $0x268] sm:$0xf]
  %v830 = vld [vmem:[%s1 + $0x270] sm:$0xf]
  %v831 = vld [vmem:[%s1 + $0x278] sm:$0xf]
  %v832 = vpack.c.bf16 %v798, %v798
  %v833 = vpack.c.bf16 %v799, %v799
  %v834 = vld [vmem:[%s1 + $0x280] sm:$0x1]
  %v835 = vunpack.c.l.bf16 %v834
  %v836 = vperm.slane %v835, 0
  %v869 = vunpack.c.l.b16 %v800
  %v870 = vunpack.c.l.b16 %v801
  %v871 = vunpack.c.l.b16 %v802
  %v872 = vunpack.c.l.b16 %v803
  %v873 = vunpack.c.l.b16 %v804
  %v874 = vunpack.c.l.b16 %v805
  %v875 = vunpack.c.l.b16 %v806
  %v876 = vunpack.c.l.b16 %v807
  %v877 = vunpack.c.l.b16 %v808
  %v878 = vunpack.c.l.b16 %v809
  %v879 = vunpack.c.l.b16 %v810
  %v880 = vunpack.c.l.b16 %v811
  %v881 = vunpack.c.l.b16 %v812
  %v882 = vunpack.c.l.b16 %v813
  %v883 = vunpack.c.l.b16 %v814
  %v884 = vunpack.c.l.b16 %v815
  %v885 = vunpack.c.l.b16 %v816
  %v886 = vunpack.c.l.b16 %v817
  %v887 = vunpack.c.l.b16 %v818
  %v888 = vunpack.c.l.b16 %v819
  %v889 = vunpack.c.l.b16 %v820
  %v890 = vunpack.c.l.b16 %v821
  %v891 = vunpack.c.l.b16 %v822
  %v892 = vunpack.c.l.b16 %v823
  %v893 = vunpack.c.l.b16 %v824
  %v894 = vunpack.c.l.b16 %v825
  %v895 = vunpack.c.l.b16 %v826
  %v896 = vunpack.c.l.b16 %v827
  %v897 = vunpack.c.l.b16 %v828
  %v898 = vunpack.c.l.b16 %v829
  %v899 = vunpack.c.l.b16 %v830
  %v900 = vunpack.c.l.b16 %v831
  %v901 = vpack.c.b16 %v870, %v869
  %v902 = vpack.c.b16 %v872, %v871
  %v903 = vpack.c.b16 %v874, %v873
  %v904 = vpack.c.b16 %v876, %v875
  %v905 = vpack.c.b16 %v878, %v877
  %v906 = vpack.c.b16 %v880, %v879
  %v907 = vpack.c.b16 %v882, %v881
  %v908 = vpack.c.b16 %v884, %v883
  %v909 = vpack.c.b16 %v886, %v885
  %v910 = vpack.c.b16 %v888, %v887
  %v911 = vpack.c.b16 %v890, %v889
  %v912 = vpack.c.b16 %v892, %v891
  %v913 = vpack.c.b16 %v894, %v893
  %v914 = vpack.c.b16 %v896, %v895
  %v915 = vpack.c.b16 %v898, %v897
  %v916 = vpack.c.b16 %v900, %v899
  %933 = vmatpush.bf16.msra.mxu0 %v908
  %934 = vmatpush.bf16.msra.mxu0 %v907
  %935 = vmatpush.bf16.msra.mxu0 %v906
  %936 = vmatpush.bf16.msra.mxu0 %v905
  %937 = vmatpush.bf16.msra.mxu0 %v904
  %938 = vmatpush.bf16.msra.mxu0 %v903
  %939 = vmatpush.bf16.msra.mxu0 %v902
  %940 = vmatpush.bf16.msra.mxu0 %v901
  %941 = vmatmul.bf16.gmra.mxu0 %v832
  %v942 = vpop.f32.mrf.mxu0
  %v943 = vadd.f32 %v836, %v942
  %v944 = vpop.f32.mrf.mxu0
  %945 = vdwg.mxu0
  %946 = vmatpush.bf16.msra.mxu0 %v916
  %947 = vmatpush.bf16.msra.mxu0 %v915
  %948 = vmatpush.bf16.msra.mxu0 %v914
  %949 = vmatpush.bf16.msra.mxu0 %v913
  %950 = vmatpush.bf16.msra.mxu0 %v912
  %951 = vmatpush.bf16.msra.mxu0 %v911
  %952 = vmatpush.bf16.msra.mxu0 %v910
  %953 = vmatpush.bf16.msra.mxu0 %v909
  %954 = vmatmul.bf16.gmra.mxu0 %v833
  %v955 = vpop.f32.mrf.mxu0
  %v956 = vadd.f32 %v943, %v955
  %v957 = vpop.f32.mrf.mxu0
  %958 = vdwg.mxu0
  %v959 = vxor.u32 %v956, 2147483648
  %v960 = vmul.f32 %v959, 1.442695
  %v961 = vpow.pop %v960
  %v962 = vadd.f32 %v961, 1.0
  %v963 = vrcp.pop %v962
  %v964 = vmul.f32 %v962, %v963
  %v965 = vsub.f32 1.0, %v964
  %v966 = vmul.f32 %v963, %v965
  %v967 = vadd.f32 %v963, %v966
  %vm968 = vweird.f32 %v962
  %vm969 = vweird.f32 %v963
  %vm970 = vmor %vm968, %vm969
  %v971 = vsel %vm970, %v963, %v967
  %v972 = vand.u32 2147483647, %v962
  %vm973 = vcmp.eq.f32.partialorder %v972, 8.507059e+37
  %v974 = vand.u32 %v962, 2147483648
  %v975 = vor.u32 1.1754944e-38, %v974
  %v976 = vsel %vm973, %v975, %v971
  %v977 = vmul.f32 1.0, %v976
  %v978 = vld [vmem:[%s1 + $0x538] sm:$0x3]
  %v980 = vsel %vm506, %v978, 0
  %982 = vmatpush.bf16.msra.mxu0 0
  %983 = vmatpush.bf16.msra.mxu0 0
  %984 = vmatpush.bf16.msra.mxu0 0
  %985 = vmatpush.bf16.msra.mxu0 0
  %986 = vmatpush.bf16.msra.mxu0 %v429
  %987 = vmatpush.bf16.msra.mxu0 %v428
  %988 = vmatpush.bf16.msra.mxu0 %v427
  %989 = vmatpush.bf16.msra.mxu0 %v426
  %990 = vmatmul.bf16.gmra.mxu0 %v980
  %v991 = vpop.f32.mrf.mxu0
  %v992 = vadd.f32 0.0, %v991
  %v993 = vpop.f32.mrf.mxu0
  %994 = vdwg.mxu0
  %v995 = vld [vmem:[%s1 + $0x288] sm:$0xff]
  %v996 = vld [vmem:[%s1 + $0x290] sm:$0xff]
  %v997 = vld [vmem:[%s1 + $0x298] sm:$0xff]
  %v998 = vld [vmem:[%s1 + $0x2a0] sm:$0xff]
  %v999 = vpack.c.bf16 %v992, %v992
  %v1000 = vld [vmem:[%s1 + $0x2a8] sm:$0x11]
  %v1001 = vunpack.c.l.bf16 %v1000
  %v1002 = vunpack.c.h.bf16 %v1000
  %v1003 = vperm.slane %v1001, 0
  %v1004 = vperm.slane %v1002, 0
  %v1009 = vunpack.c.l.b16 %v995
  %v1010 = vunpack.c.h.b16 %v995
  %v1011 = vunpack.c.l.b16 %v996
  %v1012 = vunpack.c.h.b16 %v996
  %v1013 = vunpack.c.l.b16 %v997
  %v1014 = vunpack.c.h.b16 %v997
  %v1015 = vunpack.c.l.b16 %v998
  %v1016 = vunpack.c.h.b16 %v998
  %v1017 = vpack.c.b16 %v1011, %v1009
  %v1018 = vpack.c.b16 %v1012, %v1010
  %v1019 = vpack.c.b16 %v1015, %v1013
  %v1020 = vpack.c.b16 %v1016, %v1014
  %v1026 = vsel %vm445, %v999, 0
  %1028 = vmatpush.bf16.msra.mxu0 0
  %1029 = vmatpush.bf16.msra.mxu0 0
  %1030 = vmatpush.bf16.msra.mxu0 0
  %1031 = vmatpush.bf16.msra.mxu0 0
  %1032 = vmatpush.bf16.msra.mxu0 0
  %1033 = vmatpush.bf16.msra.mxu0 0
  %1034 = vmatpush.bf16.msra.mxu0 %v1019
  %1035 = vmatpush.bf16.msra.mxu0 %v1017
  %1036 = vmatmul.bf16.gmra.mxu0 %v1026
  %v1037 = vpop.f32.mrf.mxu0
  %v1038 = vadd.f32 %v1003, %v1037
  %v1039 = vpop.f32.mrf.mxu0
  %1040 = vdwg.mxu0
  %1041 = vmatpush.bf16.msra.mxu0 0
  %1042 = vmatpush.bf16.msra.mxu0 0
  %1043 = vmatpush.bf16.msra.mxu0 0
  %1044 = vmatpush.bf16.msra.mxu0 0
  %1045 = vmatpush.bf16.msra.mxu0 0
  %1046 = vmatpush.bf16.msra.mxu0 0
  %1047 = vmatpush.bf16.msra.mxu0 %v1020
  %1048 = vmatpush.bf16.msra.mxu0 %v1018
  %1049 = vmatmul.bf16.gmra.mxu0 %v1026
  %v1050 = vpop.f32.mrf.mxu0
  %v1051 = vadd.f32 %v1004, %v1050
  %v1052 = vpop.f32.mrf.mxu0
  %1053 = vdwg.mxu0
  %v1054 = vtanh.pop %v1038
  %v1055 = vtanh.pop %v1051
  %v1056 = vld [vmem:[%s1 + $0x2b0] sm:$0xf]
  %v1057 = vld [vmem:[%s1 + $0x2b8] sm:$0xf]
  %v1058 = vld [vmem:[%s1 + $0x2c0] sm:$0xf]
  %v1059 = vld [vmem:[%s1 + $0x2c8] sm:$0xf]
  %v1060 = vld [vmem:[%s1 + $0x2d0] sm:$0xf]
  %v1061 = vld [vmem:[%s1 + $0x2d8] sm:$0xf]
  %v1062 = vld [vmem:[%s1 + $0x2e0] sm:$0xf]
  %v1063 = vld [vmem:[%s1 + $0x2e8] sm:$0xf]
  %v1064 = vld [vmem:[%s1 + $0x2f0] sm:$0xf]
  %v1065 = vld [vmem:[%s1 + $0x2f8] sm:$0xf]
  %v1066 = vld [vmem:[%s1 + $0x300] sm:$0xf]
  %v1067 = vld [vmem:[%s1 + $0x308] sm:$0xf]
  %v1068 = vld [vmem:[%s1 + $0x310] sm:$0xf]
  %v1069 = vld [vmem:[%s1 + $0x318] sm:$0xf]
  %v1070 = vld [vmem:[%s1 + $0x320] sm:$0xf]
  %v1071 = vld [vmem:[%s1 + $0x328] sm:$0xf]
  %v1072 = vld [vmem:[%s1 + $0x330] sm:$0xf]
  %v1073 = vld [vmem:[%s1 + $0x338] sm:$0xf]
  %v1074 = vld [vmem:[%s1 + $0x340] sm:$0xf]
  %v1075 = vld [vmem:[%s1 + $0x348] sm:$0xf]
  %v1076 = vld [vmem:[%s1 + $0x350] sm:$0xf]
  %v1077 = vld [vmem:[%s1 + $0x358] sm:$0xf]
  %v1078 = vld [vmem:[%s1 + $0x360] sm:$0xf]
  %v1079 = vld [vmem:[%s1 + $0x368] sm:$0xf]
  %v1080 = vld [vmem:[%s1 + $0x370] sm:$0xf]
  %v1081 = vld [vmem:[%s1 + $0x378] sm:$0xf]
  %v1082 = vld [vmem:[%s1 + $0x380] sm:$0xf]
  %v1083 = vld [vmem:[%s1 + $0x388] sm:$0xf]
  %v1084 = vld [vmem:[%s1 + $0x390] sm:$0xf]
  %v1085 = vld [vmem:[%s1 + $0x398] sm:$0xf]
  %v1086 = vld [vmem:[%s1 + $0x3a0] sm:$0xf]
  %v1087 = vld [vmem:[%s1 + $0x3a8] sm:$0xf]
  %v1088 = vpack.c.bf16 %v1054, %v1054
  %v1089 = vpack.c.bf16 %v1055, %v1055
  %v1090 = vld [vmem:[%s1 + $0x3b0] sm:$0x1]
  %v1091 = vunpack.c.l.bf16 %v1090
  %v1092 = vperm.slane %v1091, 0
  %v1125 = vunpack.c.l.b16 %v1056
  %v1126 = vunpack.c.l.b16 %v1057
  %v1127 = vunpack.c.l.b16 %v1058
  %v1128 = vunpack.c.l.b16 %v1059
  %v1129 = vunpack.c.l.b16 %v1060
  %v1130 = vunpack.c.l.b16 %v1061
  %v1131 = vunpack.c.l.b16 %v1062
  %v1132 = vunpack.c.l.b16 %v1063
  %v1133 = vunpack.c.l.b16 %v1064
  %v1134 = vunpack.c.l.b16 %v1065
  %v1135 = vunpack.c.l.b16 %v1066
  %v1136 = vunpack.c.l.b16 %v1067
  %v1137 = vunpack.c.l.b16 %v1068
  %v1138 = vunpack.c.l.b16 %v1069
  %v1139 = vunpack.c.l.b16 %v1070
  %v1140 = vunpack.c.l.b16 %v1071
  %v1141 = vunpack.c.l.b16 %v1072
  %v1142 = vunpack.c.l.b16 %v1073
  %v1143 = vunpack.c.l.b16 %v1074
  %v1144 = vunpack.c.l.b16 %v1075
  %v1145 = vunpack.c.l.b16 %v1076
  %v1146 = vunpack.c.l.b16 %v1077
  %v1147 = vunpack.c.l.b16 %v1078
  %v1148 = vunpack.c.l.b16 %v1079
  %v1149 = vunpack.c.l.b16 %v1080
  %v1150 = vunpack.c.l.b16 %v1081
  %v1151 = vunpack.c.l.b16 %v1082
  %v1152 = vunpack.c.l.b16 %v1083
  %v1153 = vunpack.c.l.b16 %v1084
  %v1154 = vunpack.c.l.b16 %v1085
  %v1155 = vunpack.c.l.b16 %v1086
  %v1156 = vunpack.c.l.b16 %v1087
  %v1157 = vpack.c.b16 %v1126, %v1125
  %v1158 = vpack.c.b16 %v1128, %v1127
  %v1159 = vpack.c.b16 %v1130, %v1129
  %v1160 = vpack.c.b16 %v1132, %v1131
  %v1161 = vpack.c.b16 %v1134, %v1133
  %v1162 = vpack.c.b16 %v1136, %v1135
  %v1163 = vpack.c.b16 %v1138, %v1137
  %v1164 = vpack.c.b16 %v1140, %v1139
  %v1165 = vpack.c.b16 %v1142, %v1141
  %v1166 = vpack.c.b16 %v1144, %v1143
  %v1167 = vpack.c.b16 %v1146, %v1145
  %v1168 = vpack.c.b16 %v1148, %v1147
  %v1169 = vpack.c.b16 %v1150, %v1149
  %v1170 = vpack.c.b16 %v1152, %v1151
  %v1171 = vpack.c.b16 %v1154, %v1153
  %v1172 = vpack.c.b16 %v1156, %v1155
  %1189 = vmatpush.bf16.msra.mxu0 %v1164
  %1190 = vmatpush.bf16.msra.mxu0 %v1163
  %1191 = vmatpush.bf16.msra.mxu0 %v1162
  %1192 = vmatpush.bf16.msra.mxu0 %v1161
  %1193 = vmatpush.bf16.msra.mxu0 %v1160
  %1194 = vmatpush.bf16.msra.mxu0 %v1159
  %1195 = vmatpush.bf16.msra.mxu0 %v1158
  %1196 = vmatpush.bf16.msra.mxu0 %v1157
  %1197 = vmatmul.bf16.gmra.mxu0 %v1088
  %v1198 = vpop.f32.mrf.mxu0
  %v1199 = vadd.f32 %v1092, %v1198
  %v1200 = vpop.f32.mrf.mxu0
  %1201 = vdwg.mxu0
  %1202 = vmatpush.bf16.msra.mxu0 %v1172
  %1203 = vmatpush.bf16.msra.mxu0 %v1171
  %1204 = vmatpush.bf16.msra.mxu0 %v1170
  %1205 = vmatpush.bf16.msra.mxu0 %v1169
  %1206 = vmatpush.bf16.msra.mxu0 %v1168
  %1207 = vmatpush.bf16.msra.mxu0 %v1167
  %1208 = vmatpush.bf16.msra.mxu0 %v1166
  %1209 = vmatpush.bf16.msra.mxu0 %v1165
  %1210 = vmatmul.bf16.gmra.mxu0 %v1089
  %v1211 = vpop.f32.mrf.mxu0
  %v1212 = vadd.f32 %v1199, %v1211
  %v1213 = vpop.f32.mrf.mxu0
  %1214 = vdwg.mxu0
  %v1215 = vxor.u32 %v1212, 2147483648
  %v1216 = vmul.f32 %v1215, 1.442695
  %v1217 = vpow.pop %v1216
  %v1218 = vadd.f32 %v1217, 1.0
  %v1219 = vrcp.pop %v1218
  %v1220 = vmul.f32 %v1218, %v1219
  %v1221 = vsub.f32 1.0, %v1220
  %v1222 = vmul.f32 %v1219, %v1221
  %v1223 = vadd.f32 %v1219, %v1222
  %vm1224 = vweird.f32 %v1218
  %vm1225 = vweird.f32 %v1219
  %vm1226 = vmor %vm1224, %vm1225
  %v1227 = vsel %vm1226, %v1219, %v1223
  %v1228 = vand.u32 2147483647, %v1218
  %vm1229 = vcmp.eq.f32.partialorder %v1228, 8.507059e+37
  %v1230 = vand.u32 %v1218, 2147483648
  %v1231 = vor.u32 1.1754944e-38, %v1230
  %v1232 = vsel %vm1229, %v1231, %v1227
  %v1233 = vmul.f32 1.0, %v1232
  %v1234 = vld [vmem:[%s1 + $0x528] sm:$0xf]
  %v1235 = vld [vmem:[%s1 + $0x530] sm:$0xf]
  %v1236 = vpack.c.bf16 %v977, %v977
  %v1239 = vunpack.c.l.b16 %v1234
  %v1240 = vunpack.c.l.b16 %v1235
  %v1241 = vpack.c.b16 %v1240, %v1239
  %v1243 = vsel %vm64, %v1241, 0
  %v1246 = vsel %vm113, %v1236, 0
  %1248 = vmatpush.bf16.msra.mxu0 0
  %1249 = vmatpush.bf16.msra.mxu0 0
  %1250 = vmatpush.bf16.msra.mxu0 0
  %1251 = vmatpush.bf16.msra.mxu0 0
  %1252 = vmatpush.bf16.msra.mxu0 0
  %1253 = vmatpush.bf16.msra.mxu0 0
  %1254 = vmatpush.bf16.msra.mxu0 0
  %1255 = vmatpush.bf16.msra.mxu0 %v1246
  %1256 = vmatmul.bf16.gmra.mxu0 %v1243
  %v1257 = vpop.f32.mrf.mxu0
  %v1258 = vadd.f32 0.0, %v1257
  %v1259 = vpop.f32.mrf.mxu0
  %v1260 = vadd.f32 0.0, %v1259
  %1261 = vdwg.mxu0
  %v1262 = vmul.f32 %v649, %v1258
  %v1263 = vmul.f32 %v650, %v1260
  %v1264 = vld [vmem:[%s1 + $0x540] sm:$0xf]
  %v1265 = vld [vmem:[%s1 + $0x548] sm:$0xf]
  %v1266 = vld [vmem:[%s1 + $0x550] sm:$0xf]
  %v1267 = vld [vmem:[%s1 + $0x558] sm:$0xf]
  %v1268 = vld [vmem:[%s1 + $0x560] sm:$0xf]
  %v1269 = vld [vmem:[%s1 + $0x568] sm:$0xf]
  %v1270 = vld [vmem:[%s1 + $0x570] sm:$0xf]
  %v1271 = vld [vmem:[%s1 + $0x578] sm:$0xf]
  %v1272 = vpack.c.bf16 %v1233, %v1233
  %v1281 = vunpack.c.l.b16 %v1264
  %v1282 = vunpack.c.l.b16 %v1265
  %v1283 = vunpack.c.l.b16 %v1266
  %v1284 = vunpack.c.l.b16 %v1267
  %v1285 = vunpack.c.l.b16 %v1268
  %v1286 = vunpack.c.l.b16 %v1269
  %v1287 = vunpack.c.l.b16 %v1270
  %v1288 = vunpack.c.l.b16 %v1271
  %v1289 = vpack.c.b16 %v1282, %v1281
  %v1290 = vpack.c.b16 %v1284, %v1283
  %v1291 = vpack.c.b16 %v1286, %v1285
  %v1292 = vpack.c.b16 %v1288, %v1287
  %v1294 = vsel %vm64, %v1289, 0
  %v1297 = vsel %vm64, %v1290, 0
  %v1300 = vsel %vm64, %v1291, 0
  %v1303 = vsel %vm64, %v1292, 0
  %v1306 = vsel %vm113, %v1272, 0
  %1308 = vmatpush.bf16.msra.mxu0 0
  %1309 = vmatpush.bf16.msra.mxu0 0
  %1310 = vmatpush.bf16.msra.mxu0 0
  %1311 = vmatpush.bf16.msra.mxu0 0
  %1312 = vmatpush.bf16.msra.mxu0 0
  %1313 = vmatpush.bf16.msra.mxu0 0
  %1314 = vmatpush.bf16.msra.mxu0 0
  %1315 = vmatpush.bf16.msra.mxu0 %v1306
  %1316 = vmatmul.bf16.gmra.mxu0 %v1294
  %v1317 = vpop.f32.mrf.mxu0
  %v1318 = vadd.f32 0.0, %v1317
  %v1319 = vpop.f32.mrf.mxu0
  %v1320 = vadd.f32 0.0, %v1319
  %1321 = vmatmul.bf16.gmra.mxu0 %v1297
  %v1322 = vpop.f32.mrf.mxu0
  %v1323 = vadd.f32 0.0, %v1322
  %v1324 = vpop.f32.mrf.mxu0
  %v1325 = vadd.f32 0.0, %v1324
  %1326 = vmatmul.bf16.gmra.mxu0 %v1300
  %v1327 = vpop.f32.mrf.mxu0
  %v1328 = vadd.f32 0.0, %v1327
  %v1329 = vpop.f32.mrf.mxu0
  %v1330 = vadd.f32 0.0, %v1329
  %1331 = vmatmul.bf16.gmra.mxu0 %v1303
  %v1332 = vpop.f32.mrf.mxu0
  %v1333 = vadd.f32 0.0, %v1332
  %v1334 = vpop.f32.mrf.mxu0
  %v1335 = vadd.f32 0.0, %v1334
  %1336 = vdwg.mxu0
  %v1337 = vmul.f32 %v414, %v1318
  %v1338 = vmul.f32 %v415, %v1320
  %v1339 = vmul.f32 %v416, %v1323
  %v1340 = vmul.f32 %v417, %v1325
  %v1341 = vmul.f32 %v418, %v1328
  %v1342 = vmul.f32 %v419, %v1330
  %v1343 = vmul.f32 %v420, %v1333
  %v1344 = vmul.f32 %v421, %v1335
  %v1345 = vld [vmem:[%s1 + $0x3b8] sm:$0xf]
  %v1346 = vld [vmem:[%s1 + $0x3c0] sm:$0xf]
  %v1347 = vld [vmem:[%s1 + $0x3c8] sm:$0xf]
  %v1348 = vld [vmem:[%s1 + $0x3d0] sm:$0xf]
  %v1349 = vld [vmem:[%s1 + $0x3d8] sm:$0xf]
  %v1350 = vld [vmem:[%s1 + $0x3e0] sm:$0xf]
  %v1351 = vld [vmem:[%s1 + $0x3e8] sm:$0xf]
  %v1352 = vld [vmem:[%s1 + $0x3f0] sm:$0xf]
  %v1353 = vld [vmem:[%s1 + $0x3f8] sm:$0xf]
  %v1354 = vld [vmem:[%s1 + $0x400] sm:$0xf]
  %v1355 = vld [vmem:[%s1 + $0x408] sm:$0xf]
  %v1356 = vld [vmem:[%s1 + $0x410] sm:$0xf]
  %v1357 = vld [vmem:[%s1 + $0x418] sm:$0xf]
  %v1358 = vld [vmem:[%s1 + $0x420] sm:$0xf]
  %v1359 = vld [vmem:[%s1 + $0x428] sm:$0xf]
  %v1360 = vld [vmem:[%s1 + $0x430] sm:$0xf]
  %v1361 = vpack.c.bf16 %v1263, %v1262
  %v1362 = vld [vmem:[%s1 + $0x438] sm:$0x1]
  %v1363 = vunpack.c.l.bf16 %v1362
  %v1364 = vperm.slane %v1363, 0
  %v1381 = vunpack.c.l.b16 %v1345
  %v1382 = vunpack.c.l.b16 %v1346
  %v1383 = vunpack.c.l.b16 %v1347
  %v1384 = vunpack.c.l.b16 %v1348
  %v1385 = vunpack.c.l.b16 %v1349
  %v1386 = vunpack.c.l.b16 %v1350
  %v1387 = vunpack.c.l.b16 %v1351
  %v1388 = vunpack.c.l.b16 %v1352
  %v1389 = vunpack.c.l.b16 %v1353
  %v1390 = vunpack.c.l.b16 %v1354
  %v1391 = vunpack.c.l.b16 %v1355
  %v1392 = vunpack.c.l.b16 %v1356
  %v1393 = vunpack.c.l.b16 %v1357
  %v1394 = vunpack.c.l.b16 %v1358
  %v1395 = vunpack.c.l.b16 %v1359
  %v1396 = vunpack.c.l.b16 %v1360
  %v1397 = vpack.c.b16 %v1382, %v1381
  %v1398 = vpack.c.b16 %v1384, %v1383
  %v1399 = vpack.c.b16 %v1386, %v1385
  %v1400 = vpack.c.b16 %v1388, %v1387
  %v1401 = vpack.c.b16 %v1390, %v1389
  %v1402 = vpack.c.b16 %v1392, %v1391
  %v1403 = vpack.c.b16 %v1394, %v1393
  %v1404 = vpack.c.b16 %v1396, %v1395
  %1413 = vmatpush.bf16.msra.mxu0 %v1404
  %1414 = vmatpush.bf16.msra.mxu0 %v1403
  %1415 = vmatpush.bf16.msra.mxu0 %v1402
  %1416 = vmatpush.bf16.msra.mxu0 %v1401
  %1417 = vmatpush.bf16.msra.mxu0 %v1400
  %1418 = vmatpush.bf16.msra.mxu0 %v1399
  %1419 = vmatpush.bf16.msra.mxu0 %v1398
  %1420 = vmatpush.bf16.msra.mxu0 %v1397
  %1421 = vmatmul.bf16.gmra.mxu0 %v1361
  %v1422 = vpop.f32.mrf.mxu0
  %v1423 = vadd.f32 %v1364, %v1422
  %v1424 = vpop.f32.mrf.mxu0
  %v1425 = vadd.f32 %v1364, %v1424
  %1426 = vdwg.mxu0
  %v1427 = vmax.f32 %v1423, 0.0
  %v1428 = vmax.f32 %v1425, 0.0
  %v1429 = vld [vmem:[%s1 + $0x440] sm:$0xf]
  %v1430 = vld [vmem:[%s1 + $0x448] sm:$0xf]
  %v1431 = vld [vmem:[%s1 + $0x450] sm:$0xf]
  %v1432 = vld [vmem:[%s1 + $0x458] sm:$0xf]
  %v1433 = vpack.c.bf16 %v1338, %v1337
  %v1434 = vpack.c.bf16 %v1340, %v1339
  %v1435 = vpack.c.bf16 %v1342, %v1341
  %v1436 = vpack.c.bf16 %v1344, %v1343
  %v1437 = vld [vmem:[%s1 + $0x460] sm:$0x1]
  %v1438 = vunpack.c.l.bf16 %v1437
  %v1439 = vperm.slane %v1438, 0
  %v1444 = vunpack.c.l.b16 %v1429
  %v1445 = vunpack.c.l.b16 %v1430
  %v1446 = vunpack.c.l.b16 %v1431
  %v1447 = vunpack.c.l.b16 %v1432
  %v1448 = vpack.c.b16 %v1445, %v1444
  %v1449 = vpack.c.b16 %v1447, %v1446
  %v1453 = vsel %vm445, %v1433, 0
  %v1456 = vsel %vm445, %v1434, 0
  %v1459 = vsel %vm445, %v1435, 0
  %v1462 = vsel %vm445, %v1436, 0
  %1464 = vmatpush.bf16.msra.mxu0 0
  %1465 = vmatpush.bf16.msra.mxu0 0
  %1466 = vmatpush.bf16.msra.mxu0 0
  %1467 = vmatpush.bf16.msra.mxu0 0
  %1468 = vmatpush.bf16.msra.mxu0 0
  %1469 = vmatpush.bf16.msra.mxu0 0
  %1470 = vmatpush.bf16.msra.mxu0 %v1449
  %1471 = vmatpush.bf16.msra.mxu0 %v1448
  %1472 = vmatmul.bf16.gmra.mxu0 %v1453
  %v1473 = vpop.f32.mrf.mxu0
  %v1474 = vadd.f32 %v1439, %v1473
  %v1475 = vpop.f32.mrf.mxu0
  %v1476 = vadd.f32 %v1439, %v1475
  %1477 = vmatmul.bf16.gmra.mxu0 %v1456
  %v1478 = vpop.f32.mrf.mxu0
  %v1479 = vadd.f32 %v1439, %v1478
  %v1480 = vpop.f32.mrf.mxu0
  %v1481 = vadd.f32 %v1439, %v1480
  %1482 = vmatmul.bf16.gmra.mxu0 %v1459
  %v1483 = vpop.f32.mrf.mxu0
  %v1484 = vadd.f32 %v1439, %v1483
  %v1485 = vpop.f32.mrf.mxu0
  %v1486 = vadd.f32 %v1439, %v1485
  %1487 = vmatmul.bf16.gmra.mxu0 %v1462
  %v1488 = vpop.f32.mrf.mxu0
  %v1489 = vadd.f32 %v1439, %v1488
  %v1490 = vpop.f32.mrf.mxu0
  %v1491 = vadd.f32 %v1439, %v1490
  %1492 = vdwg.mxu0
  %v1493 = vmax.f32 %v1474, 0.0
  %v1494 = vmax.f32 %v1476, 0.0
  %v1495 = vmax.f32 %v1479, 0.0
  %v1496 = vmax.f32 %v1481, 0.0
  %v1497 = vmax.f32 %v1484, 0.0
  %v1498 = vmax.f32 %v1486, 0.0
  %v1499 = vmax.f32 %v1489, 0.0
  %v1500 = vmax.f32 %v1491, 0.0
  %v1501 = vld [vmem:[%s1 + $0x580] sm:$0xf]
  %v1502 = vld [vmem:[%s1 + $0x588] sm:$0xf]
  %v1503 = vld [vmem:[%s1 + $0x590] sm:$0xf]
  %v1504 = vld [vmem:[%s1 + $0x598] sm:$0xf]
  %v1505 = vld [vmem:[%s1 + $0x5a0] sm:$0xf]
  %v1506 = vld [vmem:[%s1 + $0x5a8] sm:$0xf]
  %v1507 = vld [vmem:[%s1 + $0x5b0] sm:$0xf]
  %v1508 = vld [vmem:[%s1 + $0x5b8] sm:$0xf]
  %v1509 = vld [vmem:[%s1 + $0x468] sm:$0xf]
  %v1510 = vld [vmem:[%s1 + $0x470] sm:$0xf]
  %v1511 = vld [vmem:[%s1 + $0x478] sm:$0xf]
  %v1512 = vld [vmem:[%s1 + $0x480] sm:$0xf]
  %v1513 = vld [vmem:[%s1 + $0x488] sm:$0xf]
  %v1514 = vld [vmem:[%s1 + $0x490] sm:$0xf]
  %v1515 = vld [vmem:[%s1 + $0x498] sm:$0xf]
  %v1516 = vld [vmem:[%s1 + $0x4a0] sm:$0xf]
  %v1517 = vpack.c.bf16 %v1428, %v1427
  %v1526 = vunpack.c.l.b16 %v1509
  %v1527 = vunpack.c.l.b16 %v1510
  %v1528 = vunpack.c.l.b16 %v1511
  %v1529 = vunpack.c.l.b16 %v1512
  %v1530 = vunpack.c.l.b16 %v1513
  %v1531 = vunpack.c.l.b16 %v1514
  %v1532 = vunpack.c.l.b16 %v1515
  %v1533 = vunpack.c.l.b16 %v1516
  %v1534 = vpack.c.b16 %v1527, %v1526
  %v1535 = vpack.c.b16 %v1529, %v1528
  %v1536 = vpack.c.b16 %v1531, %v1530
  %v1537 = vpack.c.b16 %v1533, %v1532
  %v1543 = vsel %vm506, %v1517, 0
  %1545 = vmatpush.bf16.msra.mxu0 0
  %1546 = vmatpush.bf16.msra.mxu0 0
  %1547 = vmatpush.bf16.msra.mxu0 0
  %1548 = vmatpush.bf16.msra.mxu0 0
  %1549 = vmatpush.bf16.msra.mxu0 %v1537
  %1550 = vmatpush.bf16.msra.mxu0 %v1536
  %1551 = vmatpush.bf16.msra.mxu0 %v1535
  %1552 = vmatpush.bf16.msra.mxu0 %v1534
  %1553 = vmatmul.bf16.gmra.mxu0 %v1543
  %v1554 = vpop.f32.mrf.mxu0
  %v1555 = vadd.f32 0.0, %v1554
  %v1556 = vpop.f32.mrf.mxu0
  %v1557 = vadd.f32 0.0, %v1556
  %1558 = vdwg.mxu0
  %v1559 = vpack.c.bf16 %v1557, %v1555
  %v1560 = vld [vmem:[%s1 + $0x4a8] sm:$0xf]
  %v1561 = vld [vmem:[%s1 + $0x4b0] sm:$0xf]
  %v1562 = vpack.c.bf16 %v1494, %v1493
  %v1563 = vpack.c.bf16 %v1496, %v1495
  %v1564 = vpack.c.bf16 %v1498, %v1497
  %v1565 = vpack.c.bf16 %v1500, %v1499
  %v1568 = vunpack.c.l.b16 %v1560
  %v1569 = vunpack.c.l.b16 %v1561
  %v1570 = vpack.c.b16 %v1569, %v1568
  %v1573 = vsel %vm653, %v1562, 0
  %v1576 = vsel %vm653, %v1563, 0
  %v1579 = vsel %vm653, %v1564, 0
  %v1582 = vsel %vm653, %v1565, 0
  %1584 = vmatpush.bf16.msra.mxu0 0
  %1585 = vmatpush.bf16.msra.mxu0 0
  %1586 = vmatpush.bf16.msra.mxu0 0
  %1587 = vmatpush.bf16.msra.mxu0 0
  %1588 = vmatpush.bf16.msra.mxu0 0
  %1589 = vmatpush.bf16.msra.mxu0 0
  %1590 = vmatpush.bf16.msra.mxu0 0
  %1591 = vmatpush.bf16.msra.mxu0 %v1570
  %1592 = vmatmul.bf16.gmra.mxu0 %v1573
  %v1593 = vpop.f32.mrf.mxu0
  %v1594 = vadd.f32 0.0, %v1593
  %v1595 = vpop.f32.mrf.mxu0
  %v1596 = vadd.f32 0.0, %v1595
  %1597 = vmatmul.bf16.gmra.mxu0 %v1576
  %v1598 = vpop.f32.mrf.mxu0
  %v1599 = vadd.f32 0.0, %v1598
  %v1600 = vpop.f32.mrf.mxu0
  %v1601 = vadd.f32 0.0, %v1600
  %1602 = vmatmul.bf16.gmra.mxu0 %v1579
  %v1603 = vpop.f32.mrf.mxu0
  %v1604 = vadd.f32 0.0, %v1603
  %v1605 = vpop.f32.mrf.mxu0
  %v1606 = vadd.f32 0.0, %v1605
  %1607 = vmatmul.bf16.gmra.mxu0 %v1582
  %v1608 = vpop.f32.mrf.mxu0
  %v1609 = vadd.f32 0.0, %v1608
  %v1610 = vpop.f32.mrf.mxu0
  %v1611 = vadd.f32 0.0, %v1610
  %1612 = vdwg.mxu0
  %v1621 = vunpack.c.l.b16 %v1501
  %v1622 = vunpack.c.l.b16 %v1502
  %v1623 = vunpack.c.l.b16 %v1503
  %v1624 = vunpack.c.l.b16 %v1504
  %v1625 = vunpack.c.l.b16 %v1505
  %v1626 = vunpack.c.l.b16 %v1506
  %v1627 = vunpack.c.l.b16 %v1507
  %v1628 = vunpack.c.l.b16 %v1508
  %v1629 = vpack.c.b16 %v1622, %v1621
  %v1630 = vpack.c.b16 %v1624, %v1623
  %v1631 = vpack.c.b16 %v1626, %v1625
  %v1632 = vpack.c.b16 %v1628, %v1627
  %v1634 = vsel %vm653, %v1629, 0
  %v1637 = vsel %vm653, %v1630, 0
  %v1640 = vsel %vm653, %v1631, 0
  %v1643 = vsel %vm653, %v1632, 0
  %1645 = vmatpush.bf16.msra.mxu0 0
  %1646 = vmatpush.bf16.msra.mxu0 0
  %1647 = vmatpush.bf16.msra.mxu0 0
  %1648 = vmatpush.bf16.msra.mxu0 0
  %1649 = vmatpush.bf16.msra.mxu0 0
  %1650 = vmatpush.bf16.msra.mxu0 0
  %1651 = vmatpush.bf16.msra.mxu0 0
  %1652 = vmatpush.bf16.msra.mxu0 %v1559
  %1653 = vmatmul.bf16.gmra.mxu0 %v1634
  %v1654 = vpop.f32.mrf.mxu0
  %v1655 = vadd.f32 %v1594, %v1654
  %v1656 = vpop.f32.mrf.mxu0
  %v1657 = vadd.f32 %v1596, %v1656
  %1658 = vmatmul.bf16.gmra.mxu0 %v1637
  %v1659 = vpop.f32.mrf.mxu0
  %v1660 = vadd.f32 %v1599, %v1659
  %v1661 = vpop.f32.mrf.mxu0
  %v1662 = vadd.f32 %v1601, %v1661
  %1663 = vmatmul.bf16.gmra.mxu0 %v1640
  %v1664 = vpop.f32.mrf.mxu0
  %v1665 = vadd.f32 %v1604, %v1664
  %v1666 = vpop.f32.mrf.mxu0
  %v1667 = vadd.f32 %v1606, %v1666
  %1668 = vmatmul.bf16.gmra.mxu0 %v1643
  %v1669 = vpop.f32.mrf.mxu0
  %v1670 = vadd.f32 %v1609, %v1669
  %v1671 = vpop.f32.mrf.mxu0
  %v1672 = vadd.f32 %v1611, %v1671
  %1673 = vdwg.mxu0
  %v1674 = vld [vmem:[%s1 + $0x4b8] sm:$0x1]
  %v1675 = vunpack.c.l.bf16 %v1674
  %v1676 = vperm.slane %v1675, 0
  %v1677 = vadd.f32 %v1655, %v1676
  %v1678 = vadd.f32 %v1657, %v1676
  %v1679 = vadd.f32 %v1660, %v1676
  %v1680 = vadd.f32 %v1662, %v1676
  %v1681 = vadd.f32 %v1665, %v1676
  %v1682 = vadd.f32 %v1667, %v1676
  %v1683 = vadd.f32 %v1670, %v1676
  %v1684 = vadd.f32 %v1672, %v1676
  %v1685 = vmax.f32 %v1677, 0.0
  %v1686 = vmax.f32 %v1678, 0.0
  %v1687 = vmax.f32 %v1679, 0.0
  %v1688 = vmax.f32 %v1680, 0.0
  %v1689 = vmax.f32 %v1681, 0.0
  %v1690 = vmax.f32 %v1682, 0.0
  %v1691 = vmax.f32 %v1683, 0.0
  %v1692 = vmax.f32 %v1684, 0.0
  %v1693 = vld [vmem:[%s1 + $0x4c0] sm:$0x1]
  %v1694 = vunpack.c.l.bf16 %v1693
  %v1695 = vperm.slane %v1694, 0
  %v1696 = vmul.f32 %v1685, %v1695
  %v1697 = vmul.f32 %v1686, %v1695
  %v1698 = vmul.f32 %v1687, %v1695
  %v1699 = vmul.f32 %v1688, %v1695
  %v1700 = vmul.f32 %v1689, %v1695
  %v1701 = vmul.f32 %v1690, %v1695
  %v1702 = vmul.f32 %v1691, %v1695
  %v1703 = vmul.f32 %v1692, %v1695
  %v1704 = vsel %vm506, %v1696, 0.0
  %1705 = vadd.xlane.f32.xlu0 %v1704
  %v1706 = vpop.xlane.xlu0 %1705
  %v1707 = vsel %vm506, %v1697, 0.0
  %1708 = vadd.xlane.f32.xlu0 %v1707
  %v1709 = vpop.xlane.xlu0 %1708
  %v1710 = vsel %vm506, %v1698, 0.0
  %1711 = vadd.xlane.f32.xlu0 %v1710
  %v1712 = vpop.xlane.xlu0 %1711
  %v1713 = vsel %vm506, %v1699, 0.0
  %1714 = vadd.xlane.f32.xlu0 %v1713
  %v1715 = vpop.xlane.xlu0 %1714
  %v1716 = vsel %vm506, %v1700, 0.0
  %1717 = vadd.xlane.f32.xlu0 %v1716
  %v1718 = vpop.xlane.xlu0 %1717
  %v1719 = vsel %vm506, %v1701, 0.0
  %1720 = vadd.xlane.f32.xlu0 %v1719
  %v1721 = vpop.xlane.xlu0 %1720
  %v1722 = vsel %vm506, %v1702, 0.0
  %1723 = vadd.xlane.f32.xlu0 %v1722
  %v1724 = vpop.xlane.xlu0 %1723
  %v1725 = vsel %vm506, %v1703, 0.0
  %1726 = vadd.xlane.f32.xlu0 %v1725
  %v1727 = vpop.xlane.xlu0 %1726
  %v1728 = vld [vmem:[%s1 + $0x4c8] sm:$0x1]
  %v1729 = vunpack.c.l.bf16 %v1728
  %v1730 = vperm.slane %v1729, 0
  %v1731 = vadd.f32 %v1706, %v1730
  %v1732 = vadd.f32 %v1709, %v1730
  %v1733 = vadd.f32 %v1712, %v1730
  %v1734 = vadd.f32 %v1715, %v1730
  %v1735 = vadd.f32 %v1718, %v1730
  %v1736 = vadd.f32 %v1721, %v1730
  %v1737 = vadd.f32 %v1724, %v1730
  %v1738 = vadd.f32 %v1727, %v1730
  %v1739 = vld [vmem:[%s1 + $0x5c0] sm:$0x3]
  %v1740 = vunpack.c.l.bf16 %v1739
  %v1741 = vld [vmem:[%s1 + $0x5c8] sm:$0xff]
  %v1742 = vld [vmem:[%s1 + $0x5d0] sm:$0xff]
  %v1743 = vld [vmem:[%s1 + $0x5d8] sm:$0xff]
  %v1744 = vld [vmem:[%s1 + $0x5e0] sm:$0xff]
  %v1745 = vld [vmem:[%s1 + $0x5e8] sm:$0xff]
  %v1746 = vld [vmem:[%s1 + $0x5f0] sm:$0xff]
  %v1747 = vld [vmem:[%s1 + $0x5f8] sm:$0xff]
  %v1748 = vld [vmem:[%s1 + $0x600] sm:$0xff]
  %v1749 = vunpack.c.l.bf16 %v1741
  %v1750 = vunpack.c.h.bf16 %v1741
  %v1751 = vunpack.c.l.bf16 %v1742
  %v1752 = vunpack.c.h.bf16 %v1742
  %v1753 = vunpack.c.l.bf16 %v1743
  %v1754 = vunpack.c.h.bf16 %v1743
  %v1755 = vunpack.c.l.bf16 %v1744
  %v1756 = vunpack.c.h.bf16 %v1744
  %v1757 = vunpack.c.l.bf16 %v1745
  %v1758 = vunpack.c.h.bf16 %v1745
  %v1759 = vunpack.c.l.bf16 %v1746
  %v1760 = vunpack.c.h.bf16 %v1746
  %v1761 = vunpack.c.l.bf16 %v1747
  %v1762 = vunpack.c.h.bf16 %v1747
  %v1763 = vunpack.c.l.bf16 %v1748
  %v1764 = vunpack.c.h.bf16 %v1748
  %1766 = vset.pattern.permute.xlu0 0
  %1767 = vperm.xlu0 %1766, %v1731
  %v1768 = vpop.permute.xlu0 %1767
  %1771 = vset.pattern.permute.xlu0 0
  %1772 = vperm.xlu0 %1771, %v1732
  %v1773 = vpop.permute.xlu0 %1772
  %1776 = vset.pattern.permute.xlu0 0
  %1777 = vperm.xlu0 %1776, %v1733
  %v1778 = vpop.permute.xlu0 %1777
  %1781 = vset.pattern.permute.xlu0 0
  %1782 = vperm.xlu0 %1781, %v1734
  %v1783 = vpop.permute.xlu0 %1782
  %1786 = vset.pattern.permute.xlu0 0
  %1787 = vperm.xlu0 %1786, %v1735
  %v1788 = vpop.permute.xlu0 %1787
  %1791 = vset.pattern.permute.xlu0 0
  %1792 = vperm.xlu0 %1791, %v1736
  %v1793 = vpop.permute.xlu0 %1792
  %1796 = vset.pattern.permute.xlu0 0
  %1797 = vperm.xlu0 %1796, %v1737
  %v1798 = vpop.permute.xlu0 %1797
  %1801 = vset.pattern.permute.xlu0 0
  %1802 = vperm.xlu0 %1801, %v1738
  %v1803 = vpop.permute.xlu0 %1802
  %v1805 = vmul.f32 %v1768, %v1749
  %v1806 = vmul.f32 %v1768, %v1750
  %v1807 = vmul.f32 %v1773, %v1751
  %v1808 = vmul.f32 %v1773, %v1752
  %v1809 = vmul.f32 %v1778, %v1753
  %v1810 = vmul.f32 %v1778, %v1754
  %v1811 = vmul.f32 %v1783, %v1755
  %v1812 = vmul.f32 %v1783, %v1756
  %v1813 = vmul.f32 %v1788, %v1757
  %v1814 = vmul.f32 %v1788, %v1758
  %v1815 = vmul.f32 %v1793, %v1759
  %v1816 = vmul.f32 %v1793, %v1760
  %v1817 = vmul.f32 %v1798, %v1761
  %v1818 = vmul.f32 %v1798, %v1762
  %v1819 = vmul.f32 %v1803, %v1763
  %v1820 = vmul.f32 %v1803, %v1764
  %v1822 = vsel %vm506, %v1740, 0
  %1824 = vmatpush.msra.mxu0 0.0
  %1825 = vmatpush.msra.mxu0 0.0
  %1826 = vmatpush.msra.mxu0 0.0
  %1827 = vmatpush.msra.mxu0 0.0
  %1828 = vmatpush.msra.mxu0 0.0
  %1829 = vmatpush.msra.mxu0 0.0
  %1830 = vmatpush.msra.mxu0 0.0
  %1831 = vmatpush.msra.mxu0 0.0
  %1832 = vmatpush.msra.mxu0 %v1819
  %1833 = vmatpush.msra.mxu0 %v1817
  %1834 = vmatpush.msra.mxu0 %v1815
  %1835 = vmatpush.msra.mxu0 %v1813
  %1836 = vmatpush.msra.mxu0 %v1811
  %1837 = vmatpush.msra.mxu0 %v1809
  %1838 = vmatpush.msra.mxu0 %v1807
  %1839 = vmatpush.msra.mxu0 %v1805
  %1840 = vmatmul.f32.gmra.mxu0 %v1822
  %v1841 = vpop.f32.mrf.mxu0
  %v1842 = vadd.f32 0.0, %v1841
  %1843 = vdwg.mxu0
  %1844 = vmatpush.msra.mxu0 0.0
  %1845 = vmatpush.msra.mxu0 0.0
  %1846 = vmatpush.msra.mxu0 0.0
  %1847 = vmatpush.msra.mxu0 0.0
  %1848 = vmatpush.msra.mxu0 0.0
  %1849 = vmatpush.msra.mxu0 0.0
  %1850 = vmatpush.msra.mxu0 0.0
  %1851 = vmatpush.msra.mxu0 0.0
  %1852 = vmatpush.msra.mxu0 %v1820
  %1853 = vmatpush.msra.mxu0 %v1818
  %1854 = vmatpush.msra.mxu0 %v1816
  %1855 = vmatpush.msra.mxu0 %v1814
  %1856 = vmatpush.msra.mxu0 %v1812
  %1857 = vmatpush.msra.mxu0 %v1810
  %1858 = vmatpush.msra.mxu0 %v1808
  %1859 = vmatpush.msra.mxu0 %v1806
  %1860 = vmatmul.f32.gmra.mxu0 %v1822
  %v1861 = vpop.f32.mrf.mxu0
  %v1862 = vadd.f32 0.0, %v1861
  %1863 = vdwg.mxu0
  %v1866 = vrot.slane %v1862, 4
  %v1867 = vsel %vm381, %v1842, %v1866
  %1869 = vst [vmem:[%s2] sm:$0xff] %v1867
  // Predicated region
  $region10: #{forward.1} parent=0 // pred_check
    _
  $region11: #{forward.1} parent=0 // pred_check_branch
    %1871 = sbr.rel (0) target = $region13
  $region12: #{forward.1} parent=0 // pred_region
    _
  $region13: #{forward.1} parent=0 // pred_fallthru
    _
  // Predicated region
  $region14: #{forward.1} parent=0 // pred_check
    _
  $region15: #{forward.1} parent=0 // pred_check_branch
    %1873 = sbr.rel (0) target = $region17
  $region16: #{forward.1} parent=0 // pred_region
    _
  $region17: #{forward.1} parent=0 // pred_fallthru
    _

</llo_original>
